<compile_context>
chip_gen: v7x
topology: tpu7x:2x2x1
jax: 0.10.0
libtpu: 0.0.40
codegen_flags: <defaults>
</compile_context>

<pallas_src>
import functools

import jax
import jax.numpy as jnp
from jax import lax
from jax.experimental import pallas as pl
from jax.experimental.pallas import tpu as pltpu


def _round_up(x, m):
    return (x + m - 1) // m * m


def transpose_partial_conv2d(X, mask, X_skips, mask_skips, weight_oihw, bias,
                             *, kernel_size, stride=1, padding=0,
                             scale_factor=2, out_dtype=None):
    """Forward of TransposePartialConv2d.  All tensors are NCHW (PyTorch)."""
    assert stride == 1            # TODO(synk): stride > 1 not implemented in this kernel
    sf = int(scale_factor)
    p = int(padding)
    k = int(kernel_size)

    N, C_up, H, W = X.shape
    Ns, C_skip, Hu, Wu = X_skips.shape
    assert Ns == N and Hu == sf * H and Wu == sf * W
    Cout, Cin, kk0, kk1 = weight_oihw.shape
    assert Cin == C_up + C_skip and kk0 == k and kk1 == k
    # mask channel-sum is carried in bf16 (exact integers up to 256).
    assert Cin <= 256
    # flat-buffer formulation assumes output row stride == Wu.
    assert 2 * p <= k - 1         # TODO(synk): 2p > k-1 needs a wider row stride

    out_dtype = X.dtype if out_dtype is None else out_dtype
    bf16, f32 = jnp.bfloat16, jnp.float32

    Hout = Hu + 2 * p - k + 1
    Wout = Wu + 2 * p - k + 1
    HWlo = H * W
    HWu = Hu * Wu
    hw_flat = Hout * Wu           # flat output (row stride Wu; junk cols only if Wout < Wu)

    # zero margins around the flat image stand in for the conv's zero padding
    OFF = 0 if p == 0 else _round_up(p * Wu + p, 128)   # lane-aligned left margin
    TAIL = max(p * Wu + k, 1)
    BUF_LANES = OFF + _round_up(HWu + TAIL, 128)

    # ---- hoisted constants (built once in the wrapper, DMA'd once) ----
    # 2-D nearest x`sf` upsample as a 0/1 gather matrix on the lane-flat image.
    # TODO(synk): O((H*W)^2); with the row-tiling grid axis (see TODO below)
    # this is built per row-tile at production sizes.
    q = jnp.arange(HWu)
    src = (q // Wu // sf) * W + (q % Wu) // sf
    U2d = (src[None, :] == jnp.arange(HWlo)[:, None]).astype(bf16)       # (HWlo, HWu)

    # per-tap-column validity mask: zeroes the row-wrap lanes of the constant-
    # shift flat reads (i.e. the conv's left/right zero padding).
    xpos = jnp.arange(Wu)[None, :]
    kwv = jnp.arange(k)[:, None]
    colmask = ((xpos + kwv - p >= 0) & (xpos + kwv - p < Wu)).astype(f32)  # (k, Wu)
    colmask = jnp.tile(colmask, (1, Hout))                                 # (k, hw_flat)

    # augmented per-tap weights: real conv weights + an all-ones "mask count"
    # output row that only reads the extra mask-channel-sum buffer channel.
    w_t = jnp.transpose(weight_oihw.astype(f32), (2, 3, 0, 1))           # (k,k,Cout,Cin)
    w_aug = jnp.zeros((k, k, Cout + 1, Cin + 1), f32)
    w_aug = w_aug.at[:, :, :Cout, :Cin].set(w_t)
    w_aug = w_aug.at[:, :, Cout, Cin].set(1.0)
    w_aug = w_aug.reshape(k * k, Cout + 1, Cin + 1).astype(bf16)         # (k*k, Cout+1, Cin+1)
    bias2d = bias.reshape(Cout, 1).astype(f32)

    def kernel(xlo_ref, mlo_ref, xsk_ref, msk_ref, u2d_ref, cm_ref, w_ref,
               b_ref, o_ref, um_ref, buf_ref):
        # -- zero only the pad margins; the interior is fully overwritten below --
        if OFF > 0:
            buf_ref[:, 0:OFF] = jnp.zeros((Cin + 1, OFF), bf16)
        buf_ref[:, OFF + HWu:BUF_LANES] = jnp.zeros(
            (Cin + 1, BUF_LANES - OFF - HWu), bf16)

        # -- masked inputs, lane-flattened (VPU runs lane-dense) --
        xm_lo = xlo_ref[0] * mlo_ref[0]                                   # (C_up, HWlo) bf16
        mc_lo = jnp.sum(mlo_ref[0].astype(f32), axis=0, keepdims=True)    # (1, HWlo)
        lhs_lo = jnp.concatenate([xm_lo, mc_lo.astype(bf16)], axis=0)     # (C_up+1, HWlo)

        # -- nearest x sf upsample (H and W fused) of features + mask-sum: one dot --
        up = jnp.dot(lhs_lo, u2d_ref[...], preferred_element_type=f32)    # (C_up+1, HWu)

        xm_sk = xsk_ref[0] * msk_ref[0]                                   # (C_skip, HWu) bf16
        mc_sk = jnp.sum(msk_ref[0].astype(f32), axis=0, keepdims=True)    # (1, HWu)

        # -- assemble masked image + mask-count channel: 3 lane-aligned slab stores --
        buf_ref[0:C_up, OFF:OFF + HWu] = up[:C_up, :].astype(bf16)
        buf_ref[C_up:Cin, OFF:OFF + HWu] = xm_sk
        buf_ref[Cin:Cin + 1, OFF:OFF + HWu] = (
            up[C_up:C_up + 1, :] + mc_sk).astype(bf16)

        # -- k*k accumulated dots straight off the flat buffer (no im2col copy) --
        acc = jnp.zeros((Cout + 1, hw_flat), f32)
        for kw in range(k):
            part = jnp.zeros((Cout + 1, hw_flat), f32)
            for kh in range(k):
                s = OFF + (kh - p) * Wu + (kw - p)
                part = part + jnp.dot(w_ref[kh * k + kw],
                                      buf_ref[:, s:s + hw_flat],
                                      preferred_element_type=f32)
            if kw != p:                           # kw == p: every column valid
                part = part * cm_ref[kw:kw + 1, :]
            acc = acc + part

        conv = acc[:Cout, :]
        msum = acc[Cout:Cout + 1, :]              # partial-conv valid-pixel count
        um = jnp.clip(msum, 0.0, 1.0)
        scale = (float(Cin * k * k)
                 * pl.reciprocal(msum + 1e-8, approx=True)) * um
        o_ref[0] = ((conv * scale + b_ref[...]) * um).astype(o_ref.dtype)
        um_ref[0] = um.astype(um_ref.dtype)
        # TODO(synk): optional norm/activation heads (module defaults are None).

    # TODO(synk): add a spatial row-tile grid axis with a (k-1)-row halo for
    # production decoder stages (mandatory for v7x 64 MiB VMEM and v5e's 16 MiB
    # scoped default; also supplies pipeline depth / second-TC work).  At v6e,
    # processing >=2 batch items per step would widen the matmul RHS lanes.
    grid_spec = pltpu.PrefetchScalarGridSpec(
        num_scalar_prefetch=0,
        grid=(N,),
        in_specs=[
            pl.BlockSpec((1, C_up, HWlo), lambda b: (b, 0, 0)),
            pl.BlockSpec((1, C_up, HWlo), lambda b: (b, 0, 0)),
            pl.BlockSpec((1, C_skip, HWu), lambda b: (b, 0, 0)),
            pl.BlockSpec((1, C_skip, HWu), lambda b: (b, 0, 0)),
            pl.BlockSpec((HWlo, HWu), lambda b: (0, 0)),
            pl.BlockSpec((k, hw_flat), lambda b: (0, 0)),
            pl.BlockSpec((k * k, Cout + 1, Cin + 1), lambda b: (0, 0, 0)),
            pl.BlockSpec((Cout, 1), lambda b: (0, 0)),
        ],
        out_specs=[
            pl.BlockSpec((1, Cout, hw_flat), lambda b: (b, 0, 0)),
            pl.BlockSpec((1, 1, hw_flat), lambda b: (b, 0, 0)),
        ],
        scratch_shapes=[pltpu.VMEM((Cin + 1, BUF_LANES), bf16)],
    )

    out_x, out_um = pl.pallas_call(
        kernel,
        out_shape=(
            jax.ShapeDtypeStruct((N, Cout, hw_flat), out_dtype),
            jax.ShapeDtypeStruct((N, 1, hw_flat), jnp.float32),
        ),
        grid_spec=grid_spec,
        compiler_params=pltpu.CompilerParams(
            dimension_semantics=("parallel",)),   # batch iterations independent
    )(X.reshape(N, C_up, HWlo).astype(bf16),       # free metadata reshapes, bf16 DMA
      mask.reshape(N, C_up, HWlo).astype(bf16),
      X_skips.reshape(N, C_skip, HWu).astype(bf16),
      mask_skips.reshape(N, C_skip, HWu).astype(bf16),
      U2d, colmask, w_aug, bias2d)

    Y = out_x.reshape(N, Cout, Hout, Wu)
    um1 = out_um.reshape(N, 1, Hout, Wu)
    if Wout != Wu:                 # only when 2p < k-1 (junk columns present)
        Y = Y[..., :Wout]
        um1 = um1[..., :Wout]
    # Kernel emits a single-channel updated mask; broadcast only for PyTorch
    # shape parity (consumers should prefer the 1-channel view).
    um_full = jnp.broadcast_to(um1, (N, Cout, Hout, Wout)).astype(jnp.float32)
    return Y, um_full


def _reference(X, mask, X_skips, mask_skips, weight_oihw, bias,
               *, kernel_size, padding, scale_factor):
    """Pure-JAX reference (mirrors the PyTorch forward) for correctness check."""
    sf = int(scale_factor)
    Xu = jnp.repeat(jnp.repeat(X, sf, axis=2), sf, axis=3)
    mu = jnp.repeat(jnp.repeat(mask, sf, axis=2), sf, axis=3)
    Xc = jnp.concatenate([Xu, X_skips], axis=1)
    mc = jnp.concatenate([mu, mask_skips], axis=1)

    Cout, Cin, k, _ = weight_oihw.shape
    dn = lax.conv_dimension_numbers(Xc.shape, weight_oihw.shape,
                                    ("NCHW", "OIHW", "NCHW"))
    pad = [(padding, padding), (padding, padding)]
    ones_w = jnp.ones((Cout, Cin, k, k), jnp.float32)

    update_mask = lax.conv_general_dilated(mc, ones_w, (1, 1), pad,
                                           dimension_numbers=dn)
    scale = Cin * k * k / (update_mask + 1e-8)
    update_mask = jnp.clip(update_mask, 0.0, 1.0)
    scale = scale * update_mask

    Y = lax.conv_general_dilated(Xc * mc, weight_oihw, (1, 1), pad,
                                 dimension_numbers=dn)
    Y = Y * scale + bias.reshape(1, -1, 1, 1)
    Y = Y * update_mask
    return Y, update_mask


if __name__ == "__main__":
    key = jax.random.PRNGKey(0)
    k_x, k_m, k_xs, k_ms, k_w = jax.random.split(key, 5)

    # decoder feature [2, 4, 8, 8] upsampled x2 -> [2, 4, 16, 16],
    # skip connection [2, 4, 16, 16]; concat -> in_channels = 8
    B, C_up, C_skip = 2, 4, 4
    H, W = 8, 8
    out_channels = 8
    kernel_size, stride, padding, scale_factor = 3, 1, 1, 2
    in_channels = C_up + C_skip

    X = jax.random.normal(k_x, (B, C_up, H, W), jnp.float32)
    mask = jax.random.bernoulli(k_m, 0.7, (B, C_up, H, W)).astype(jnp.float32)
    X_skips = jax.random.normal(k_xs, (B, C_skip, 2 * H, 2 * W), jnp.float32)
    mask_skips = jax.random.bernoulli(
        k_ms, 0.7, (B, C_skip, 2 * H, 2 * W)).astype(jnp.float32)

    # deterministic "kaiming" (fan_in, leaky_relu gain sqrt(2)) conv weight, zero bias
    fan_in = in_channels * kernel_size * kernel_size
    std = (2.0 / fan_in) ** 0.5
    weight_oihw = std * jax.random.normal(
        k_w, (out_channels, in_channels, kernel_size, kernel_size), jnp.float32)
    bias = jnp.zeros((out_channels,), jnp.float32)

    run = functools.partial(transpose_partial_conv2d,
                            kernel_size=kernel_size, stride=stride,
                            padding=padding, scale_factor=scale_factor)
    out_x, out_mask = jax.block_until_ready(
        run(X, mask, X_skips, mask_skips, weight_oihw, bias))

    ref_x, ref_mask = _reference(X, mask, X_skips, mask_skips, weight_oihw,
                                 bias, kernel_size=kernel_size,
                                 padding=padding, scale_factor=scale_factor)

    assert out_x.shape == (B, out_channels, 2 * H, 2 * W)
    assert out_mask.shape == (B, out_channels, 2 * H, 2 * W)
    # bf16 MXU operands + EUP approx reciprocal -> relaxed tolerance for the
    # feature output; the updated mask is exact (integer counts in f32).
    assert jnp.allclose(out_x, ref_x, rtol=5e-2, atol=5e-2)
    assert jnp.allclose(out_mask, ref_mask, rtol=1e-5, atol=1e-5)

    print("KERNEL_OK")
</pallas_src>

<mosaic_0001>
module attributes {stable_mosaic.version = 11 : i64} {
  func.func @kernel(%arg0: i32, %arg1: memref<1x4x64xbf16, #tpu.memory_space<vmem>>, %arg2: memref<1x4x64xbf16, #tpu.memory_space<vmem>>, %arg3: memref<1x4x256xbf16, #tpu.memory_space<vmem>>, %arg4: memref<1x4x256xbf16, #tpu.memory_space<vmem>>, %arg5: memref<64x256xbf16, #tpu.memory_space<vmem>>, %arg6: memref<3x256xf32, #tpu.memory_space<vmem>>, %arg7: memref<9x9x9xbf16, #tpu.memory_space<vmem>>, %arg8: memref<8x1xf32, #tpu.memory_space<vmem>>, %arg9: memref<1x8x256xf32, #tpu.memory_space<vmem>>, %arg10: memref<1x1x256xf32, #tpu.memory_space<vmem>>, %arg11: memref<9x512xbf16, #tpu.memory_space<vmem>>) attributes {dimension_semantics = [#tpu.dimension_semantics<parallel>], iteration_bounds = array<i64: 2>, scalar_prefetch = 0 : i64, scratch_operands = 1 : i64, tpu.core_type = #tpu.core_type<tc>, window_params = [{transform_indices = @transform_0, window_bounds = array<i64: 1, 4, 64>}, {transform_indices = @transform_1, window_bounds = array<i64: 1, 4, 64>}, {transform_indices = @transform_2, window_bounds = array<i64: 1, 4, 256>}, {transform_indices = @transform_3, window_bounds = array<i64: 1, 4, 256>}, {pipeline_mode = #tpu.pipeline_mode<synchronous>, transform_indices = @transform_4, window_bounds = array<i64: 64, 256>}, {pipeline_mode = #tpu.pipeline_mode<synchronous>, transform_indices = @transform_5, window_bounds = array<i64: 3, 256>}, {pipeline_mode = #tpu.pipeline_mode<synchronous>, transform_indices = @transform_6, window_bounds = array<i64: 9, 9, 9>}, {pipeline_mode = #tpu.pipeline_mode<synchronous>, transform_indices = @transform_7, window_bounds = array<i64: 8, 1>}, {transform_indices = @transform_8, window_bounds = array<i64: 1, 8, 256>}, {transform_indices = @transform_9, window_bounds = array<i64: 1, 1, 256>}]} {
    %cst = arith.constant 0.000000e+00 : bf16
    %0 = vector.broadcast %cst : bf16 to vector<9x128xbf16>
    %c0 = arith.constant 0 : index
    %c0_0 = arith.constant 0 : index
    %1 = vector.load %arg11[%c0, %c0_0] : memref<9x512xbf16, #tpu.memory_space<vmem>>, vector<9x128xbf16>
    tpu.vector_store %arg11[%c0, %c0_0], %0 {strides = array<i32>} : memref<9x512xbf16, #tpu.memory_space<vmem>>, vector<9x128xbf16>,
    %cst_1 = arith.constant 0.000000e+00 : bf16
    %2 = vector.broadcast %cst_1 : bf16 to vector<9x128xbf16>
    %c0_2 = arith.constant 0 : index
    %c384 = arith.constant 384 : index
    %3 = vector.load %arg11[%c0_2, %c384] : memref<9x512xbf16, #tpu.memory_space<vmem>>, vector<9x128xbf16>
    tpu.vector_store %arg11[%c0_2, %c384], %2 {strides = array<i32>} : memref<9x512xbf16, #tpu.memory_space<vmem>>, vector<9x128xbf16>,
    %c0_3 = arith.constant 0 : index
    %c0_4 = arith.constant 0 : index
    %c0_5 = arith.constant 0 : index
    %4 = vector.load %arg1[%c0_3, %c0_4, %c0_5] : memref<1x4x64xbf16, #tpu.memory_space<vmem>>, vector<1x4x64xbf16>
    %5 = vector.shape_cast %4 : vector<1x4x64xbf16> to vector<4x64xbf16>
    %c0_6 = arith.constant 0 : index
    %c0_7 = arith.constant 0 : index
    %c0_8 = arith.constant 0 : index
    %6 = vector.load %arg2[%c0_6, %c0_7, %c0_8] : memref<1x4x64xbf16, #tpu.memory_space<vmem>>, vector<1x4x64xbf16>
    %7 = vector.shape_cast %6 : vector<1x4x64xbf16> to vector<4x64xbf16>
    %8 = arith.mulf %5, %7 : vector<4x64xbf16>
    %c0_9 = arith.constant 0 : index
    %c0_10 = arith.constant 0 : index
    %c0_11 = arith.constant 0 : index
    %9 = vector.load %arg2[%c0_9, %c0_10, %c0_11] : memref<1x4x64xbf16, #tpu.memory_space<vmem>>, vector<1x4x64xbf16>
    %10 = vector.shape_cast %9 : vector<1x4x64xbf16> to vector<4x64xbf16>
    %11 = arith.extf %10 : vector<4x64xbf16> to vector<4x64xf32>
    %cst_12 = arith.constant dense<0.000000e+00> : vector<64xf32>
    %12 = vector.multi_reduction <add>, %11, %cst_12 [0] : vector<4x64xf32> to vector<64xf32>
    %13 = vector.shape_cast %12 : vector<64xf32> to vector<1x64xf32>
    %14 = arith.truncf %13 : vector<1x64xf32> to vector<1x64xbf16>
    %15 = tpu.concatenate %8, %14 in 0 : vector<4x64xbf16>, vector<1x64xbf16> -> vector<5x64xbf16>
    %c0_13 = arith.constant 0 : index
    %c0_14 = arith.constant 0 : index
    %16 = vector.load %arg5[%c0_13, %c0_14] : memref<64x256xbf16, #tpu.memory_space<vmem>>, vector<64x256xbf16>
    %cst_15 = arith.constant dense<0.000000e+00> : vector<5x256xf32>
    %17 = tpu.matmul %15, %16, %cst_15 {dimension_numbers = #tpu.dot_dimension_numbers<[1], [0], [0], [1], [0, 0, 1, 1], [], []>} : vector<5x64xbf16>, vector<64x256xbf16>, vector<5x256xf32> -> vector<5x256xf32>
    %c0_16 = arith.constant 0 : index
    %c0_17 = arith.constant 0 : index
    %c0_18 = arith.constant 0 : index
    %18 = vector.load %arg3[%c0_16, %c0_17, %c0_18] : memref<1x4x256xbf16, #tpu.memory_space<vmem>>, vector<1x4x256xbf16>
    %19 = vector.shape_cast %18 : vector<1x4x256xbf16> to vector<4x256xbf16>
    %c0_19 = arith.constant 0 : index
    %c0_20 = arith.constant 0 : index
    %c0_21 = arith.constant 0 : index
    %20 = vector.load %arg4[%c0_19, %c0_20, %c0_21] : memref<1x4x256xbf16, #tpu.memory_space<vmem>>, vector<1x4x256xbf16>
    %21 = vector.shape_cast %20 : vector<1x4x256xbf16> to vector<4x256xbf16>
    %22 = arith.mulf %19, %21 : vector<4x256xbf16>
    %c0_22 = arith.constant 0 : index
    %c0_23 = arith.constant 0 : index
    %c0_24 = arith.constant 0 : index
    %23 = vector.load %arg4[%c0_22, %c0_23, %c0_24] : memref<1x4x256xbf16, #tpu.memory_space<vmem>>, vector<1x4x256xbf16>
    %24 = vector.shape_cast %23 : vector<1x4x256xbf16> to vector<4x256xbf16>
    %25 = arith.extf %24 : vector<4x256xbf16> to vector<4x256xf32>
    %cst_25 = arith.constant dense<0.000000e+00> : vector<256xf32>
    %26 = vector.multi_reduction <add>, %25, %cst_25 [0] : vector<4x256xf32> to vector<256xf32>
    %27 = vector.shape_cast %26 : vector<256xf32> to vector<1x256xf32>
    %28 = vector.extract_strided_slice %17 {offsets = [0, 0], sizes = [4, 256], strides = [1, 1]} : vector<5x256xf32> to vector<4x256xf32>
    %29 = arith.truncf %28 : vector<4x256xf32> to vector<4x256xbf16>
    %c0_26 = arith.constant 0 : index
    %c128 = arith.constant 128 : index
    %30 = vector.load %arg11[%c0_26, %c128] : memref<9x512xbf16, #tpu.memory_space<vmem>>, vector<4x256xbf16>
    tpu.vector_store %arg11[%c0_26, %c128], %29 {strides = array<i32>} : memref<9x512xbf16, #tpu.memory_space<vmem>>, vector<4x256xbf16>,
    %c4 = arith.constant 4 : index
    %c128_27 = arith.constant 128 : index
    %31 = vector.load %arg11[%c4, %c128_27] : memref<9x512xbf16, #tpu.memory_space<vmem>>, vector<4x256xbf16>
    tpu.vector_store %arg11[%c4, %c128_27], %22 {strides = array<i32>} : memref<9x512xbf16, #tpu.memory_space<vmem>>, vector<4x256xbf16>,
    %32 = vector.extract_strided_slice %17 {offsets = [4, 0], sizes = [1, 256], strides = [1, 1]} : vector<5x256xf32> to vector<1x256xf32>
    %33 = arith.addf %32, %27 : vector<1x256xf32>
    %34 = arith.truncf %33 : vector<1x256xf32> to vector<1x256xbf16>
    %c8 = arith.constant 8 : index
    %c128_28 = arith.constant 128 : index
    %35 = vector.load %arg11[%c8, %c128_28] : memref<9x512xbf16, #tpu.memory_space<vmem>>, vector<1x256xbf16>
    tpu.vector_store %arg11[%c8, %c128_28], %34 {strides = array<i32>} : memref<9x512xbf16, #tpu.memory_space<vmem>>, vector<1x256xbf16>,
    %cst_29 = arith.constant 0.000000e+00 : f32
    %36 = vector.broadcast %cst_29 : f32 to vector<9x256xf32>
    %cst_30 = arith.constant 0.000000e+00 : f32
    %37 = vector.broadcast %cst_30 : f32 to vector<9x256xf32>
    %c0_31 = arith.constant 0 : index
    %c0_32 = arith.constant 0 : index
    %c0_33 = arith.constant 0 : index
    %38 = vector.load %arg7[%c0_31, %c0_32, %c0_33] : memref<9x9x9xbf16, #tpu.memory_space<vmem>>, vector<1x9x9xbf16>
    %39 = vector.shape_cast %38 : vector<1x9x9xbf16> to vector<9x9xbf16>
    %c0_34 = arith.constant 0 : index
    %c111 = arith.constant 111 : index
    %40 = vector.load %arg11[%c0_34, %c111] : memref<9x512xbf16, #tpu.memory_space<vmem>>, vector<9x256xbf16>
    %cst_35 = arith.constant dense<0.000000e+00> : vector<9x256xf32>
    %41 = tpu.matmul %39, %40, %cst_35 {dimension_numbers = #tpu.dot_dimension_numbers<[1], [0], [0], [1], [0, 0, 1, 1], [], []>} : vector<9x9xbf16>, vector<9x256xbf16>, vector<9x256xf32> -> vector<9x256xf32>
    %42 = arith.addf %37, %41 : vector<9x256xf32>
    %c3 = arith.constant 3 : index
    %c0_36 = arith.constant 0 : index
    %c0_37 = arith.constant 0 : index
    %43 = vector.load %arg7[%c3, %c0_36, %c0_37] : memref<9x9x9xbf16, #tpu.memory_space<vmem>>, vector<1x9x9xbf16>
    %44 = vector.shape_cast %43 : vector<1x9x9xbf16> to vector<9x9xbf16>
    %c0_38 = arith.constant 0 : index
    %c127 = arith.constant 127 : index
    %45 = vector.load %arg11[%c0_38, %c127] : memref<9x512xbf16, #tpu.memory_space<vmem>>, vector<9x256xbf16>
    %cst_39 = arith.constant dense<0.000000e+00> : vector<9x256xf32>
    %46 = tpu.matmul %44, %45, %cst_39 {dimension_numbers = #tpu.dot_dimension_numbers<[1], [0], [0], [1], [0, 0, 1, 1], [], []>} : vector<9x9xbf16>, vector<9x256xbf16>, vector<9x256xf32> -> vector<9x256xf32>
    %47 = arith.addf %42, %46 : vector<9x256xf32>
    %c6 = arith.constant 6 : index
    %c0_40 = arith.constant 0 : index
    %c0_41 = arith.constant 0 : index
    %48 = vector.load %arg7[%c6, %c0_40, %c0_41] : memref<9x9x9xbf16, #tpu.memory_space<vmem>>, vector<1x9x9xbf16>
    %49 = vector.shape_cast %48 : vector<1x9x9xbf16> to vector<9x9xbf16>
    %c0_42 = arith.constant 0 : index
    %c143 = arith.constant 143 : index
    %50 = vector.load %arg11[%c0_42, %c143] : memref<9x512xbf16, #tpu.memory_space<vmem>>, vector<9x256xbf16>
    %cst_43 = arith.constant dense<0.000000e+00> : vector<9x256xf32>
    %51 = tpu.matmul %49, %50, %cst_43 {dimension_numbers = #tpu.dot_dimension_numbers<[1], [0], [0], [1], [0, 0, 1, 1], [], []>} : vector<9x9xbf16>, vector<9x256xbf16>, vector<9x256xf32> -> vector<9x256xf32>
    %52 = arith.addf %47, %51 : vector<9x256xf32>
    %c0_44 = arith.constant 0 : index
    %c0_45 = arith.constant 0 : index
    %53 = vector.load %arg6[%c0_44, %c0_45] : memref<3x256xf32, #tpu.memory_space<vmem>>, vector<1x256xf32>
    %54 = vector.broadcast %53 : vector<1x256xf32> to vector<9x256xf32>
    %55 = arith.mulf %52, %54 : vector<9x256xf32>
    %56 = arith.addf %36, %55 : vector<9x256xf32>
    %cst_46 = arith.constant 0.000000e+00 : f32
    %57 = vector.broadcast %cst_46 : f32 to vector<9x256xf32>
    %c1 = arith.constant 1 : index
    %c0_47 = arith.constant 0 : index
    %c0_48 = arith.constant 0 : index
    %58 = vector.load %arg7[%c1, %c0_47, %c0_48] : memref<9x9x9xbf16, #tpu.memory_space<vmem>>, vector<1x9x9xbf16>
    %59 = vector.shape_cast %58 : vector<1x9x9xbf16> to vector<9x9xbf16>
    %c0_49 = arith.constant 0 : index
    %c112 = arith.constant 112 : index
    %60 = vector.load %arg11[%c0_49, %c112] : memref<9x512xbf16, #tpu.memory_space<vmem>>, vector<9x256xbf16>
    %cst_50 = arith.constant dense<0.000000e+00> : vector<9x256xf32>
    %61 = tpu.matmul %59, %60, %cst_50 {dimension_numbers = #tpu.dot_dimension_numbers<[1], [0], [0], [1], [0, 0, 1, 1], [], []>} : vector<9x9xbf16>, vector<9x256xbf16>, vector<9x256xf32> -> vector<9x256xf32>
    %62 = arith.addf %57, %61 : vector<9x256xf32>
    %c4_51 = arith.constant 4 : index
    %c0_52 = arith.constant 0 : index
    %c0_53 = arith.constant 0 : index
    %63 = vector.load %arg7[%c4_51, %c0_52, %c0_53] : memref<9x9x9xbf16, #tpu.memory_space<vmem>>, vector<1x9x9xbf16>
    %64 = vector.shape_cast %63 : vector<1x9x9xbf16> to vector<9x9xbf16>
    %c0_54 = arith.constant 0 : index
    %c128_55 = arith.constant 128 : index
    %65 = vector.load %arg11[%c0_54, %c128_55] : memref<9x512xbf16, #tpu.memory_space<vmem>>, vector<9x256xbf16>
    %cst_56 = arith.constant dense<0.000000e+00> : vector<9x256xf32>
    %66 = tpu.matmul %64, %65, %cst_56 {dimension_numbers = #tpu.dot_dimension_numbers<[1], [0], [0], [1], [0, 0, 1, 1], [], []>} : vector<9x9xbf16>, vector<9x256xbf16>, vector<9x256xf32> -> vector<9x256xf32>
    %67 = arith.addf %62, %66 : vector<9x256xf32>
    %c7 = arith.constant 7 : index
    %c0_57 = arith.constant 0 : index
    %c0_58 = arith.constant 0 : index
    %68 = vector.load %arg7[%c7, %c0_57, %c0_58] : memref<9x9x9xbf16, #tpu.memory_space<vmem>>, vector<1x9x9xbf16>
    %69 = vector.shape_cast %68 : vector<1x9x9xbf16> to vector<9x9xbf16>
    %c0_59 = arith.constant 0 : index
    %c144 = arith.constant 144 : index
    %70 = vector.load %arg11[%c0_59, %c144] : memref<9x512xbf16, #tpu.memory_space<vmem>>, vector<9x256xbf16>
    %cst_60 = arith.constant dense<0.000000e+00> : vector<9x256xf32>
    %71 = tpu.matmul %69, %70, %cst_60 {dimension_numbers = #tpu.dot_dimension_numbers<[1], [0], [0], [1], [0, 0, 1, 1], [], []>} : vector<9x9xbf16>, vector<9x256xbf16>, vector<9x256xf32> -> vector<9x256xf32>
    %72 = arith.addf %67, %71 : vector<9x256xf32>
    %73 = arith.addf %56, %72 : vector<9x256xf32>
    %cst_61 = arith.constant 0.000000e+00 : f32
    %74 = vector.broadcast %cst_61 : f32 to vector<9x256xf32>
    %c2 = arith.constant 2 : index
    %c0_62 = arith.constant 0 : index
    %c0_63 = arith.constant 0 : index
    %75 = vector.load %arg7[%c2, %c0_62, %c0_63] : memref<9x9x9xbf16, #tpu.memory_space<vmem>>, vector<1x9x9xbf16>
    %76 = vector.shape_cast %75 : vector<1x9x9xbf16> to vector<9x9xbf16>
    %c0_64 = arith.constant 0 : index
    %c113 = arith.constant 113 : index
    %77 = vector.load %arg11[%c0_64, %c113] : memref<9x512xbf16, #tpu.memory_space<vmem>>, vector<9x256xbf16>
    %cst_65 = arith.constant dense<0.000000e+00> : vector<9x256xf32>
    %78 = tpu.matmul %76, %77, %cst_65 {dimension_numbers = #tpu.dot_dimension_numbers<[1], [0], [0], [1], [0, 0, 1, 1], [], []>} : vector<9x9xbf16>, vector<9x256xbf16>, vector<9x256xf32> -> vector<9x256xf32>
    %79 = arith.addf %74, %78 : vector<9x256xf32>
    %c5 = arith.constant 5 : index
    %c0_66 = arith.constant 0 : index
    %c0_67 = arith.constant 0 : index
    %80 = vector.load %arg7[%c5, %c0_66, %c0_67] : memref<9x9x9xbf16, #tpu.memory_space<vmem>>, vector<1x9x9xbf16>
    %81 = vector.shape_cast %80 : vector<1x9x9xbf16> to vector<9x9xbf16>
    %c0_68 = arith.constant 0 : index
    %c129 = arith.constant 129 : index
    %82 = vector.load %arg11[%c0_68, %c129] : memref<9x512xbf16, #tpu.memory_space<vmem>>, vector<9x256xbf16>
    %cst_69 = arith.constant dense<0.000000e+00> : vector<9x256xf32>
    %83 = tpu.matmul %81, %82, %cst_69 {dimension_numbers = #tpu.dot_dimension_numbers<[1], [0], [0], [1], [0, 0, 1, 1], [], []>} : vector<9x9xbf16>, vector<9x256xbf16>, vector<9x256xf32> -> vector<9x256xf32>
    %84 = arith.addf %79, %83 : vector<9x256xf32>
    %c8_70 = arith.constant 8 : index
    %c0_71 = arith.constant 0 : index
    %c0_72 = arith.constant 0 : index
    %85 = vector.load %arg7[%c8_70, %c0_71, %c0_72] : memref<9x9x9xbf16, #tpu.memory_space<vmem>>, vector<1x9x9xbf16>
    %86 = vector.shape_cast %85 : vector<1x9x9xbf16> to vector<9x9xbf16>
    %c0_73 = arith.constant 0 : index
    %c145 = arith.constant 145 : index
    %87 = vector.load %arg11[%c0_73, %c145] : memref<9x512xbf16, #tpu.memory_space<vmem>>, vector<9x256xbf16>
    %cst_74 = arith.constant dense<0.000000e+00> : vector<9x256xf32>
    %88 = tpu.matmul %86, %87, %cst_74 {dimension_numbers = #tpu.dot_dimension_numbers<[1], [0], [0], [1], [0, 0, 1, 1], [], []>} : vector<9x9xbf16>, vector<9x256xbf16>, vector<9x256xf32> -> vector<9x256xf32>
    %89 = arith.addf %84, %88 : vector<9x256xf32>
    %c2_75 = arith.constant 2 : index
    %c0_76 = arith.constant 0 : index
    %90 = vector.load %arg6[%c2_75, %c0_76] : memref<3x256xf32, #tpu.memory_space<vmem>>, vector<1x256xf32>
    %91 = vector.broadcast %90 : vector<1x256xf32> to vector<9x256xf32>
    %92 = arith.mulf %89, %91 : vector<9x256xf32>
    %93 = arith.addf %73, %92 : vector<9x256xf32>
    %94 = vector.extract_strided_slice %93 {offsets = [0, 0], sizes = [8, 256], strides = [1, 1]} : vector<9x256xf32> to vector<8x256xf32>
    %95 = vector.extract_strided_slice %93 {offsets = [8, 0], sizes = [1, 256], strides = [1, 1]} : vector<9x256xf32> to vector<1x256xf32>
    %cst_77 = arith.constant 0.000000e+00 : f32
    %cst_78 = arith.constant 1.000000e+00 : f32
    %96 = vector.broadcast %cst_77 : f32 to vector<1x256xf32>
    %97 = arith.maximumf %96, %95 : vector<1x256xf32>
    %98 = vector.broadcast %cst_78 : f32 to vector<1x256xf32>
    %99 = arith.minimumf %98, %97 : vector<1x256xf32>
    %cst_79 = arith.constant 9.99999993E-9 : f32
    %100 = vector.broadcast %cst_79 : f32 to vector<1x256xf32>
    %101 = arith.addf %95, %100 : vector<1x256xf32>
    %102 = tpu.reciprocal %101 {approx = true} : vector<1x256xf32> -> vector<1x256xf32>
    %cst_80 = arith.constant 7.200000e+01 : f32
    %103 = vector.broadcast %cst_80 : f32 to vector<1x256xf32>
    %104 = arith.mulf %103, %102 : vector<1x256xf32>
    %105 = arith.mulf %104, %99 : vector<1x256xf32>
    %106 = vector.broadcast %105 : vector<1x256xf32> to vector<8x256xf32>
    %107 = arith.mulf %94, %106 : vector<8x256xf32>
    %c0_81 = arith.constant 0 : index
    %c0_82 = arith.constant 0 : index
    %108 = vector.load %arg8[%c0_81, %c0_82] : memref<8x1xf32, #tpu.memory_space<vmem>>, vector<8x1xf32>
    %109 = vector.broadcast %108 : vector<8x1xf32> to vector<8x256xf32>
    %110 = arith.addf %107, %109 : vector<8x256xf32>
    %111 = vector.broadcast %99 : vector<1x256xf32> to vector<8x256xf32>
    %112 = arith.mulf %110, %111 : vector<8x256xf32>
    %c0_83 = arith.constant 0 : index
    %c0_84 = arith.constant 0 : index
    %c0_85 = arith.constant 0 : index
    %113 = vector.load %arg9[%c0_83, %c0_84, %c0_85] : memref<1x8x256xf32, #tpu.memory_space<vmem>>, vector<1x8x256xf32>
    %114 = vector.shape_cast %113 : vector<1x8x256xf32> to vector<8x256xf32>
    %115 = vector.shape_cast %112 : vector<8x256xf32> to vector<1x8x256xf32>
    tpu.vector_store %arg9[%c0_83, %c0_84, %c0_85], %115 {strides = array<i32>} : memref<1x8x256xf32, #tpu.memory_space<vmem>>, vector<1x8x256xf32>,
    %c0_86 = arith.constant 0 : index
    %c0_87 = arith.constant 0 : index
    %c0_88 = arith.constant 0 : index
    %116 = vector.load %arg10[%c0_86, %c0_87, %c0_88] : memref<1x1x256xf32, #tpu.memory_space<vmem>>, vector<1x1x256xf32>
    %117 = vector.shape_cast %116 : vector<1x1x256xf32> to vector<1x256xf32>
    %118 = vector.shape_cast %99 : vector<1x256xf32> to vector<1x1x256xf32>
    tpu.vector_store %arg10[%c0_86, %c0_87, %c0_88], %118 {strides = array<i32>} : memref<1x1x256xf32, #tpu.memory_space<vmem>>, vector<1x1x256xf32>,
    return
  }
  func.func @transform_0(%arg0: i32) -> (i32, i32, i32) {
    %c0_i32 = arith.constant 0 : i32
    %c0_i32_0 = arith.constant 0 : i32
    %c0_i32_1 = arith.constant 0 : i32
    return %arg0, %c0_i32, %c0_i32_0 : i32, i32, i32
  }
  func.func @transform_1(%arg0: i32) -> (i32, i32, i32) {
    %c0_i32 = arith.constant 0 : i32
    %c0_i32_0 = arith.constant 0 : i32
    %c0_i32_1 = arith.constant 0 : i32
    return %arg0, %c0_i32, %c0_i32_0 : i32, i32, i32
  }
  func.func @transform_2(%arg0: i32) -> (i32, i32, i32) {
    %c0_i32 = arith.constant 0 : i32
    %c0_i32_0 = arith.constant 0 : i32
    %c0_i32_1 = arith.constant 0 : i32
    return %arg0, %c0_i32, %c0_i32_0 : i32, i32, i32
  }
  func.func @transform_3(%arg0: i32) -> (i32, i32, i32) {
    %c0_i32 = arith.constant 0 : i32
    %c0_i32_0 = arith.constant 0 : i32
    %c0_i32_1 = arith.constant 0 : i32
    return %arg0, %c0_i32, %c0_i32_0 : i32, i32, i32
  }
  func.func @transform_4(%arg0: i32) -> (i32, i32) {
    %c0_i32 = arith.constant 0 : i32
    %c0_i32_0 = arith.constant 0 : i32
    %c0_i32_1 = arith.constant 0 : i32
    return %c0_i32, %c0_i32_0 : i32, i32
  }
  func.func @transform_5(%arg0: i32) -> (i32, i32) {
    %c0_i32 = arith.constant 0 : i32
    %c0_i32_0 = arith.constant 0 : i32
    %c0_i32_1 = arith.constant 0 : i32
    return %c0_i32, %c0_i32_0 : i32, i32
  }
  func.func @transform_6(%arg0: i32) -> (i32, i32, i32) {
    %c0_i32 = arith.constant 0 : i32
    %c0_i32_0 = arith.constant 0 : i32
    %c0_i32_1 = arith.constant 0 : i32
    %c0_i32_2 = arith.constant 0 : i32
    return %c0_i32, %c0_i32_0, %c0_i32_1 : i32, i32, i32
  }
  func.func @transform_7(%arg0: i32) -> (i32, i32) {
    %c0_i32 = arith.constant 0 : i32
    %c0_i32_0 = arith.constant 0 : i32
    %c0_i32_1 = arith.constant 0 : i32
    return %c0_i32, %c0_i32_0 : i32, i32
  }
  func.func @transform_8(%arg0: i32) -> (i32, i32, i32) {
    %c0_i32 = arith.constant 0 : i32
    %c0_i32_0 = arith.constant 0 : i32
    %c0_i32_1 = arith.constant 0 : i32
    return %arg0, %c0_i32, %c0_i32_0 : i32, i32, i32
  }
  func.func @transform_9(%arg0: i32) -> (i32, i32, i32) {
    %c0_i32 = arith.constant 0 : i32
    %c0_i32_0 = arith.constant 0 : i32
    %c0_i32_1 = arith.constant 0 : i32
    return %arg0, %c0_i32, %c0_i32_0 : i32, i32, i32
  }
}

</mosaic_0001>

<llo_original>
// kernel: tpu_custom_call.1
$region0: #{tpu_custom_call.1}
  #allocation0 [shape = 'u32[]', space=smem, size = 0x4, offset = 0x4, fixed_abs, tag = 'smem constant byte address 0x4 - core index']
  #allocation1 [shape = 'u32[144,128]{1,0:T(1,128)}', space=vmem, size = 0x12000, scoped, tag = 'internal scratch']
  #allocation2 [shape = 'bf16[9,512]{1,0:T(8,128)(2,1)}', space=vmem, size = 0x4000, scoped, tag = 'scratch operand']
  %s0 = inlined_call_operand.hbm [shape: bf16[2,4,64], index: 0, kind: input, shape index: {}]
  %s1 = inlined_call_operand.hbm [shape: bf16[2,4,64], index: 1, kind: input, shape index: {}]
  %s2 = inlined_call_operand.vmem [shape: bf16[2,4,256], index: 2, kind: input, shape index: {}]
  %s3 = inlined_call_operand.vmem [shape: bf16[2,4,256], index: 3, kind: input, shape index: {}]
  %s4 = inlined_call_operand.hbm [shape: bf16[64,256], index: 4, kind: input, shape index: {}]
  %s5 = inlined_call_operand.vmem [shape: f32[3,256], index: 5, kind: input, shape index: {}]
  %s6 = inlined_call_operand.hbm [shape: bf16[9,9,9], index: 6, kind: input, shape index: {}]
  %s7 = inlined_call_operand.vmem [shape: f32[8,1], index: 7, kind: input, shape index: {}]
  %s8 = inlined_call_operand.hbm [shape: f32[2,8,256], index: 8, kind: output, shape index: {0}]
  %s9 = inlined_call_operand.hbm [shape: f32[2,1,256], index: 9, kind: output, shape index: {1}]
  %10 = xla_tuple %s8, %s9
  %s11 = sld [smem:[#allocation0]]
  $region89: #{tpu_custom_call.1} parent=0
    _
  %s13 = ssub.s32 1, %s11
  %s14 = scalar_select 0, %s13, %s11
  $region1: #{tpu_custom_call.1} parent=0
    #allocation3 [shape = 'u8[2048]{0}', space=vmem, size = 0x800, scoped, tag = 'input window, operand 0']
    #allocation4 [shape = 's32[2]{0}', space=sflag, size = 0x8, scoped, tag = 'scoped memory for tpu_custom_call.1']
    #allocation5 [shape = 's32[2]{0}', space=sflag, size = 0x8, scoped, tag = 'scoped memory for tpu_custom_call.1']
    #allocation6 [shape = 'u8[2048]{0}', space=vmem, size = 0x800, scoped, tag = 'input window, operand 1']
    #allocation7 [shape = 's32[2]{0}', space=sflag, size = 0x8, scoped, tag = 'scoped memory for tpu_custom_call.1']
    #allocation8 [shape = 'u8[32768]{0}', space=vmem, size = 0x8000, scoped, tag = 'input window, operand 4, single buffered']
    #allocation9 [shape = 'u8[36864]{0}', space=vmem, size = 0x9000, scoped, tag = 'input window, operand 6, single buffered']
    #allocation10 [shape = 's32[1]{0}', space=sflag, size = 0x4, scoped, tag = 'scoped memory for tpu_custom_call.1']
    #allocation11 [shape = 'u8[16384]{0}', space=vmem, size = 0x4000, scoped, tag = 'output window, operand 0']
    #allocation12 [shape = 'u8[2048]{0}', space=vmem, size = 0x800, scoped, tag = 'output window, operand 1']
    #allocation13 [shape = 's32[2]{0}', space=sflag, size = 0x8, scoped, tag = 'scoped memory for tpu_custom_call.1']
    %15 = vsyncpa [#allocation4], 0
    %s16 = scalar_lea.sflag [#allocation4], 1
    %17 = vsyncpa %s16, 0
    %18 = vsyncpa [#allocation7], 0
    %s19 = scalar_lea.sflag [#allocation7], 1
    %20 = vsyncpa %s19, 0
    %21 = vsyncpa [#allocation10], 0
    %22 = vsyncpa [#allocation5], 0
    %s23 = scalar_lea.sflag [#allocation5], 1
    %24 = vsyncpa %s23, 0
    %25 = vsyncpa [#allocation13], 0
    %s26 = scalar_lea.sflag [#allocation13], 1
    %27 = vsyncpa %s26, 0
    loop: start=0, step=1, limit=4
    $region2: #{tpu_custom_call.1} parent=1 // loop_pre_header
      _
    $region3: #{tpu_custom_call.1} parent=1 // loop_header
      %s29 = sphi 0, %s33
      %p30 = scmp.ge.s32.totalorder %s29, 4
      %s39 = sphi 0, %s41
      %s42 = sphi 0, %s39
      %s43 = sphi 0, %s42
      %s59 = sphi 0, %s43
      %s65 = sphi 0, %s67
      %s68 = sphi 0, %s65
      %s69 = sphi 0, %s68
      %s85 = sphi 0, %s69
      %s91 = sphi 0, %s93
      %s94 = sphi 0, %s91
      %s95 = sphi 0, %s94
      %s111 = sphi 0, %s95
      %s117 = sphi 0, %s119
      %s120 = sphi 0, %s117
      %s121 = sphi 0, %s120
      %s137 = sphi 0, %s121
      %s141 = sphi 0, %s141
      %s143 = sphi 0, %s141
      %s144 = sphi 0, %s143
      %s158 = sphi 0, %s144
      %s162 = sphi 0, %s162
      %s164 = sphi 0, %s162
      %s165 = sphi 0, %s164
      %s179 = sphi 0, %s165
      %s183 = sphi 0, %s183
      %s185 = sphi 0, %s183
      %s186 = sphi 0, %s185
      %s200 = sphi 0, %s186
      %s204 = sphi 0, %s204
      %s206 = sphi 0, %s204
      %s207 = sphi 0, %s206
      %s221 = sphi 0, %s207
      %s227 = sphi 0, %s229
      %s230 = sphi 0, %s227
      %s231 = sphi 0, %s230
      %s247 = sphi 0, %s231
      %s253 = sphi 0, %s255
      %s256 = sphi 0, %s253
      %s257 = sphi 0, %s256
      %s273 = sphi 0, %s257
    $region4: #{tpu_custom_call.1} parent=1 // loop_header_branch
      %32 = sbr.rel (%p30) target = $region8
    $region5: #{tpu_custom_call.1} parent=1 // loop_body
      %s34 = ssub.s32 %s29, 1
      %s35 = ssub.s32 %s29, 2
      %s36 = sadd.s32 %s29, 1
      %s37 = ssub.s32 %s29, %s36
      %p38 = scmp.eq.s32.totalorder %s37, 0
      %s40 = sadd.s32 %s39, 1
      %s41 = scalar_select %p38, %s39, %s40
      %p44 = pneg %p38
      %p45 = scmp.eq.s32.totalorder %s29, 1
      %p46 = por %p44, %p45
      %p47 = scmp.ne.s32.totalorder %s39, %s42
      %p48 = scmp.eq.s32.totalorder %s29, 0
      %p49 = por %p47, %p48
      %p50 = scmp.ne.s32.totalorder %s39, %s42
      %p51 = scmp.eq.s32.totalorder %s34, 1
      %p52 = por %p50, %p51
      %p53 = scmp.ne.s32.totalorder %s42, %s43
      %p54 = scmp.eq.s32.totalorder %s34, 0
      %p55 = por %p53, %p54
      %p56 = scmp.ne.s32.totalorder %s42, %s43
      %p57 = scmp.eq.s32.totalorder %s35, 1
      %p58 = por %p56, %p57
      %p60 = scmp.ne.s32.totalorder %s43, %s59
      %p61 = scmp.eq.s32.totalorder %s35, 0
      %p62 = por %p60, %p61
      %s63 = ssub.s32 %s29, %s36
      %p64 = scmp.eq.s32.totalorder %s63, 0
      %s66 = sadd.s32 %s65, 1
      %s67 = scalar_select %p64, %s65, %s66
      %p70 = pneg %p64
      %p71 = scmp.eq.s32.totalorder %s29, 1
      %p72 = por %p70, %p71
      %p73 = scmp.ne.s32.totalorder %s65, %s68
      %p74 = scmp.eq.s32.totalorder %s29, 0
      %p75 = por %p73, %p74
      %p76 = scmp.ne.s32.totalorder %s65, %s68
      %p77 = scmp.eq.s32.totalorder %s34, 1
      %p78 = por %p76, %p77
      %p79 = scmp.ne.s32.totalorder %s68, %s69
      %p80 = scmp.eq.s32.totalorder %s34, 0
      %p81 = por %p79, %p80
      %p82 = scmp.ne.s32.totalorder %s68, %s69
      %p83 = scmp.eq.s32.totalorder %s35, 1
      %p84 = por %p82, %p83
      %p86 = scmp.ne.s32.totalorder %s69, %s85
      %p87 = scmp.eq.s32.totalorder %s35, 0
      %p88 = por %p86, %p87
      %s89 = ssub.s32 %s29, %s36
      %p90 = scmp.eq.s32.totalorder %s89, 0
      %s92 = sadd.s32 %s91, 1
      %s93 = scalar_select %p90, %s91, %s92
      %p96 = pneg %p90
      %p97 = scmp.eq.s32.totalorder %s29, 1
      %p98 = por %p96, %p97
      %p99 = scmp.ne.s32.totalorder %s91, %s94
      %p100 = scmp.eq.s32.totalorder %s29, 0
      %p101 = por %p99, %p100
      %p102 = scmp.ne.s32.totalorder %s91, %s94
      %p103 = scmp.eq.s32.totalorder %s34, 1
      %p104 = por %p102, %p103
      %p105 = scmp.ne.s32.totalorder %s94, %s95
      %p106 = scmp.eq.s32.totalorder %s34, 0
      %p107 = por %p105, %p106
      %p108 = scmp.ne.s32.totalorder %s94, %s95
      %p109 = scmp.eq.s32.totalorder %s35, 1
      %p110 = por %p108, %p109
      %p112 = scmp.ne.s32.totalorder %s95, %s111
      %p113 = scmp.eq.s32.totalorder %s35, 0
      %p114 = por %p112, %p113
      %s115 = ssub.s32 %s29, %s36
      %p116 = scmp.eq.s32.totalorder %s115, 0
      %s118 = sadd.s32 %s117, 1
      %s119 = scalar_select %p116, %s117, %s118
      %p122 = pneg %p116
      %p123 = scmp.eq.s32.totalorder %s29, 1
      %p124 = por %p122, %p123
      %p125 = scmp.ne.s32.totalorder %s117, %s120
      %p126 = scmp.eq.s32.totalorder %s29, 0
      %p127 = por %p125, %p126
      %p128 = scmp.ne.s32.totalorder %s117, %s120
      %p129 = scmp.eq.s32.totalorder %s34, 1
      %p130 = por %p128, %p129
      %p131 = scmp.ne.s32.totalorder %s120, %s121
      %p132 = scmp.eq.s32.totalorder %s34, 0
      %p133 = por %p131, %p132
      %p134 = scmp.ne.s32.totalorder %s120, %s121
      %p135 = scmp.eq.s32.totalorder %s35, 1
      %p136 = por %p134, %p135
      %p138 = scmp.ne.s32.totalorder %s121, %s137
      %p139 = scmp.eq.s32.totalorder %s35, 0
      %p140 = por %p138, %p139
      %s142 = sadd.s32 %s141, 1
      %p145 = scmp.eq.s32.totalorder %s29, 1
      %p146 = scmp.ne.s32.totalorder %s141, %s143
      %p147 = scmp.eq.s32.totalorder %s29, 0
      %p148 = por %p146, %p147
      %p149 = scmp.ne.s32.totalorder %s141, %s143
      %p150 = scmp.eq.s32.totalorder %s34, 1
      %p151 = por %p149, %p150
      %p152 = scmp.ne.s32.totalorder %s143, %s144
      %p153 = scmp.eq.s32.totalorder %s34, 0
      %p154 = por %p152, %p153
      %p155 = scmp.ne.s32.totalorder %s143, %s144
      %p156 = scmp.eq.s32.totalorder %s35, 1
      %p157 = por %p155, %p156
      %p159 = scmp.ne.s32.totalorder %s144, %s158
      %p160 = scmp.eq.s32.totalorder %s35, 0
      %p161 = por %p159, %p160
      %s163 = sadd.s32 %s162, 1
      %p166 = scmp.eq.s32.totalorder %s29, 1
      %p167 = scmp.ne.s32.totalorder %s162, %s164
      %p168 = scmp.eq.s32.totalorder %s29, 0
      %p169 = por %p167, %p168
      %p170 = scmp.ne.s32.totalorder %s162, %s164
      %p171 = scmp.eq.s32.totalorder %s34, 1
      %p172 = por %p170, %p171
      %p173 = scmp.ne.s32.totalorder %s164, %s165
      %p174 = scmp.eq.s32.totalorder %s34, 0
      %p175 = por %p173, %p174
      %p176 = scmp.ne.s32.totalorder %s164, %s165
      %p177 = scmp.eq.s32.totalorder %s35, 1
      %p178 = por %p176, %p177
      %p180 = scmp.ne.s32.totalorder %s165, %s179
      %p181 = scmp.eq.s32.totalorder %s35, 0
      %p182 = por %p180, %p181
      %s184 = sadd.s32 %s183, 1
      %p187 = scmp.eq.s32.totalorder %s29, 1
      %p188 = scmp.ne.s32.totalorder %s183, %s185
      %p189 = scmp.eq.s32.totalorder %s29, 0
      %p190 = por %p188, %p189
      %p191 = scmp.ne.s32.totalorder %s183, %s185
      %p192 = scmp.eq.s32.totalorder %s34, 1
      %p193 = por %p191, %p192
      %p194 = scmp.ne.s32.totalorder %s185, %s186
      %p195 = scmp.eq.s32.totalorder %s34, 0
      %p196 = por %p194, %p195
      %p197 = scmp.ne.s32.totalorder %s185, %s186
      %p198 = scmp.eq.s32.totalorder %s35, 1
      %p199 = por %p197, %p198
      %p201 = scmp.ne.s32.totalorder %s186, %s200
      %p202 = scmp.eq.s32.totalorder %s35, 0
      %p203 = por %p201, %p202
      %s205 = sadd.s32 %s204, 1
      %p208 = scmp.eq.s32.totalorder %s29, 1
      %p209 = scmp.ne.s32.totalorder %s204, %s206
      %p210 = scmp.eq.s32.totalorder %s29, 0
      %p211 = por %p209, %p210
      %p212 = scmp.ne.s32.totalorder %s204, %s206
      %p213 = scmp.eq.s32.totalorder %s34, 1
      %p214 = por %p212, %p213
      %p215 = scmp.ne.s32.totalorder %s206, %s207
      %p216 = scmp.eq.s32.totalorder %s34, 0
      %p217 = por %p215, %p216
      %p218 = scmp.ne.s32.totalorder %s206, %s207
      %p219 = scmp.eq.s32.totalorder %s35, 1
      %p220 = por %p218, %p219
      %p222 = scmp.ne.s32.totalorder %s207, %s221
      %p223 = scmp.eq.s32.totalorder %s35, 0
      %p224 = por %p222, %p223
      %s225 = ssub.s32 %s29, %s36
      %p226 = scmp.eq.s32.totalorder %s225, 0
      %s228 = sadd.s32 %s227, 1
      %s229 = scalar_select %p226, %s227, %s228
      %p232 = pneg %p226
      %p233 = scmp.eq.s32.totalorder %s29, 1
      %p234 = por %p232, %p233
      %p235 = scmp.ne.s32.totalorder %s227, %s230
      %p236 = scmp.eq.s32.totalorder %s29, 0
      %p237 = por %p235, %p236
      %p238 = scmp.ne.s32.totalorder %s227, %s230
      %p239 = scmp.eq.s32.totalorder %s34, 1
      %p240 = por %p238, %p239
      %p241 = scmp.ne.s32.totalorder %s230, %s231
      %p242 = scmp.eq.s32.totalorder %s34, 0
      %p243 = por %p241, %p242
      %p244 = scmp.ne.s32.totalorder %s230, %s231
      %p245 = scmp.eq.s32.totalorder %s35, 1
      %p246 = por %p244, %p245
      %p248 = scmp.ne.s32.totalorder %s231, %s247
      %p249 = scmp.eq.s32.totalorder %s35, 0
      %p250 = por %p248, %p249
      %s251 = ssub.s32 %s29, %s36
      %p252 = scmp.eq.s32.totalorder %s251, 0
      %s254 = sadd.s32 %s253, 1
      %s255 = scalar_select %p252, %s253, %s254
      %p258 = pneg %p252
      %p259 = scmp.eq.s32.totalorder %s29, 1
      %p260 = por %p258, %p259
      %p261 = scmp.ne.s32.totalorder %s253, %s256
      %p262 = scmp.eq.s32.totalorder %s29, 0
      %p263 = por %p261, %p262
      %p264 = scmp.ne.s32.totalorder %s253, %s256
      %p265 = scmp.eq.s32.totalorder %s34, 1
      %p266 = por %p264, %p265
      %p267 = scmp.ne.s32.totalorder %s256, %s257
      %p268 = scmp.eq.s32.totalorder %s34, 0
      %p269 = por %p267, %p268
      %p270 = scmp.ne.s32.totalorder %s256, %s257
      %p271 = scmp.eq.s32.totalorder %s35, 1
      %p272 = por %p270, %p271
      %p274 = scmp.ne.s32.totalorder %s257, %s273
      %p275 = scmp.eq.s32.totalorder %s35, 0
      %p276 = por %p274, %p275
      %p277 = scmp.le.s32.totalorder 1, %s29
      %p278 = scmp.lt.s32.totalorder %s29, 3
      %p279 = pnand %p277, %p278
      %p280 = pneg %p279
      // Predicated region
      $region9: #{tpu_custom_call.1} parent=5 // pred_check
        _
      $region10: #{tpu_custom_call.1} parent=5 // pred_check_branch
        %282 = sbr.rel (%p279) target = $region12
      $region11: #{tpu_custom_call.1} parent=5 // pred_region
        %s283 = ssub.s32 %s29, 1
        // Predicated region
        $region13: #{tpu_custom_call.1} parent=11 // pred_check
          %p284 = pneg %p154
        $region14: #{tpu_custom_call.1} parent=11 // pred_check_branch
          %286 = sbr.rel (%p284) target = $region16
        $region15: #{tpu_custom_call.1} parent=11 // pred_region
          %s288 = ssub.s32 1024, 1024
          %289 = vsyncadd [#allocation7], %s288
          %s290 = sshll.u32 [#allocation8], 4
          %s291 = int_to_ptr.vmem [resolvable:$true] %s290
          %296 = dma.hbm_to_vmem [thread:$0]  %s4, 1024, %s291, [#allocation7], 128, 128, 8
        $region16: #{tpu_custom_call.1} parent=11 // pred_fallthru
          _
        // Predicated region
        $region17: #{tpu_custom_call.1} parent=11 // pred_check
          %p297 = pneg %p175
        $region18: #{tpu_custom_call.1} parent=11 // pred_check_branch
          %299 = sbr.rel (%p297) target = $region20
        $region19: #{tpu_custom_call.1} parent=11 // pred_region
          _
        $region20: #{tpu_custom_call.1} parent=11 // pred_fallthru
          _
        // Predicated region
        $region21: #{tpu_custom_call.1} parent=11 // pred_check
          %p300 = pneg %p196
        $region22: #{tpu_custom_call.1} parent=11 // pred_check_branch
          %302 = sbr.rel (%p300) target = $region24
        $region23: #{tpu_custom_call.1} parent=11 // pred_region
          %s304 = ssub.s32 1152, 1152
          %305 = vsyncadd [#allocation10], %s304
          %s306 = sshll.u32 [#allocation9], 4
          %s307 = int_to_ptr.vmem [resolvable:$true] %s306
          %312 = dma.hbm_to_vmem [thread:$0]  %s6, 1152, %s307, [#allocation10], 64, 64, 4
        $region24: #{tpu_custom_call.1} parent=11 // pred_fallthru
          _
        // Predicated region
        $region25: #{tpu_custom_call.1} parent=11 // pred_check
          %p313 = pneg %p217
        $region26: #{tpu_custom_call.1} parent=11 // pred_check_branch
          %315 = sbr.rel (%p313) target = $region28
        $region27: #{tpu_custom_call.1} parent=11 // pred_region
          _
        $region28: #{tpu_custom_call.1} parent=11 // pred_fallthru
          _
      $region12: #{tpu_custom_call.1} parent=5 // pred_fallthru
        _
      %p316 = scmp.lt.s32.totalorder %s29, 2
      // Predicated region
      $region29: #{tpu_custom_call.1} parent=5 // pred_check
        %p317 = pneg %p316
      $region30: #{tpu_custom_call.1} parent=5 // pred_check_branch
        %319 = sbr.rel (%p317) target = $region32
      $region31: #{tpu_custom_call.1} parent=5 // pred_region
        // Predicated region
        $region33: #{tpu_custom_call.1} parent=31 // pred_check
          %p320 = pneg %p49
        $region34: #{tpu_custom_call.1} parent=31 // pred_check_branch
          %322 = sbr.rel (%p320) target = $region36
        $region35: #{tpu_custom_call.1} parent=31 // pred_region
          %s323 = sand.u32 %s39, 1
          %s324 = scalar_lea.sflag [#allocation4], %s323
          %s325 = sand.u32 %s39, 1
          %s326 = smul.addr %s325, 2
          %s327 = scalar_lea.vmem [#allocation3], %s326
          %s329 = ssub.s32 32, 32
          %330 = vsyncadd %s324, %s329
          %s331 = smul.addr %s29, 32
          %s332 = scalar_lea.hbm %s0, %s331
          %s334 = sshll.u32 %s327, 4
          %s335 = int_to_ptr.vmem [resolvable:$true] %s334
          %337 = dma.hbm_to_vmem [thread:$0]  %s332, 32, %s335, %s324
        $region36: #{tpu_custom_call.1} parent=31 // pred_fallthru
          _
        // Predicated region
        $region37: #{tpu_custom_call.1} parent=31 // pred_check
          %p338 = pneg %p75
        $region38: #{tpu_custom_call.1} parent=31 // pred_check_branch
          %340 = sbr.rel (%p338) target = $region40
        $region39: #{tpu_custom_call.1} parent=31 // pred_region
          %s341 = sand.u32 %s29, 1
          %s342 = scalar_lea.sflag [#allocation7], %s341
          %s343 = sand.u32 %s65, 1
          %s344 = smul.addr %s343, 2
          %s345 = scalar_lea.vmem [#allocation6], %s344
          %s347 = ssub.s32 32, 32
          %348 = vsyncadd %s342, %s347
          %s349 = smul.addr %s29, 32
          %s350 = scalar_lea.hbm %s1, %s349
          %s352 = sshll.u32 %s345, 4
          %s353 = int_to_ptr.vmem [resolvable:$true] %s352
          %355 = dma.hbm_to_vmem [thread:$0]  %s350, 32, %s353, %s342
        $region40: #{tpu_custom_call.1} parent=31 // pred_fallthru
          _
        // Predicated region
        $region41: #{tpu_custom_call.1} parent=31 // pred_check
          %p356 = pneg %p101
        $region42: #{tpu_custom_call.1} parent=31 // pred_check_branch
          %358 = sbr.rel (%p356) target = $region44
        $region43: #{tpu_custom_call.1} parent=31 // pred_region
          %p359 = scmp.lt.s32.totalorder %s29, 1
          %s360 = scalar_select %p359, %s29, 1
          %s361 = smul.addr %s360, 2
          %s362 = smul.addr %s361, 2
          %s363 = scalar_lea.vmem %s2, %s362
        $region44: #{tpu_custom_call.1} parent=31 // pred_fallthru
          _
        // Predicated region
        $region45: #{tpu_custom_call.1} parent=31 // pred_check
          %p364 = pneg %p127
        $region46: #{tpu_custom_call.1} parent=31 // pred_check_branch
          %366 = sbr.rel (%p364) target = $region48
        $region47: #{tpu_custom_call.1} parent=31 // pred_region
          %p367 = scmp.lt.s32.totalorder %s29, 1
          %s368 = scalar_select %p367, %s29, 1
          %s369 = smul.addr %s368, 2
          %s370 = smul.addr %s369, 2
          %s371 = scalar_lea.vmem %s3, %s370
        $region48: #{tpu_custom_call.1} parent=31 // pred_fallthru
          _
      $region32: #{tpu_custom_call.1} parent=5 // pred_fallthru
        _
      %p372 = scmp.le.s32.totalorder 1, %s29
      %p373 = scmp.lt.s32.totalorder %s29, 3
      %p374 = pnand %p372, %p373
      %p375 = pneg %p374
      // Predicated region
      $region49: #{tpu_custom_call.1} parent=5 // pred_check
        _
      $region50: #{tpu_custom_call.1} parent=5 // pred_check_branch
        %377 = sbr.rel (%p374) target = $region52
      $region51: #{tpu_custom_call.1} parent=5 // pred_region
        %s378 = ssub.s32 %s29, 1
        %s379 = sand.u32 %s42, 1
        %s380 = scalar_lea.sflag [#allocation4], %s379
        %s381 = sand.u32 %s42, 1
        %s382 = smul.addr %s381, 2
        %s383 = scalar_lea.vmem [#allocation3], %s382
        // Predicated region
        $region53: #{tpu_custom_call.1} parent=51 // pred_check
          %p384 = pneg %p55
        $region54: #{tpu_custom_call.1} parent=51 // pred_check_branch
          %386 = sbr.rel (%p384) target = $region56
        $region55: #{tpu_custom_call.1} parent=51 // pred_region
          %387 = dma.done %s380, 32
        $region56: #{tpu_custom_call.1} parent=51 // pred_fallthru
          _
        %s388 = sand.u32 %s34, 1
        %s389 = scalar_lea.sflag [#allocation7], %s388
        %s390 = sand.u32 %s68, 1
        %s391 = smul.addr %s390, 2
        %s392 = scalar_lea.vmem [#allocation6], %s391
        // Predicated region
        $region57: #{tpu_custom_call.1} parent=51 // pred_check
          %p393 = pneg %p81
        $region58: #{tpu_custom_call.1} parent=51 // pred_check_branch
          %395 = sbr.rel (%p393) target = $region60
        $region59: #{tpu_custom_call.1} parent=51 // pred_region
          %396 = dma.done %s389, 32
        $region60: #{tpu_custom_call.1} parent=51 // pred_fallthru
          _
        // Predicated region
        $region61: #{tpu_custom_call.1} parent=51 // pred_check
          %p397 = pneg %p154
        $region62: #{tpu_custom_call.1} parent=51 // pred_check_branch
          %399 = sbr.rel (%p397) target = $region64
        $region63: #{tpu_custom_call.1} parent=51 // pred_region
          %400 = dma.done [#allocation7], 1024
        $region64: #{tpu_custom_call.1} parent=51 // pred_fallthru
          _
        // Predicated region
        $region65: #{tpu_custom_call.1} parent=51 // pred_check
          %p401 = pneg %p196
        $region66: #{tpu_custom_call.1} parent=51 // pred_check_branch
          %403 = sbr.rel (%p401) target = $region68
        $region67: #{tpu_custom_call.1} parent=51 // pred_region
          %404 = dma.done [#allocation10], 1152
        $region68: #{tpu_custom_call.1} parent=51 // pred_fallthru
          _
        %s405 = sand.u32 %s42, 1
        %s406 = scalar_lea.sflag [#allocation4], %s405
        %s407 = sand.u32 %s42, 1
        %s408 = smul.addr %s407, 2
        %s409 = scalar_lea.vmem [#allocation3], %s408
        %p410 = pneg %p55
        %p411 = pneg %p52
        %s412 = sand.u32 %s34, 1
        %s413 = scalar_lea.sflag [#allocation7], %s412
        %s414 = sand.u32 %s68, 1
        %s415 = smul.addr %s414, 2
        %s416 = scalar_lea.vmem [#allocation6], %s415
        %p417 = pneg %p81
        %p418 = pneg %p78
        %p419 = scmp.lt.s32.totalorder %s34, 1
        %s420 = scalar_select %p419, %s34, 1
        %s421 = smul.addr %s420, 2
        %s422 = smul.addr %s421, 2
        %s423 = scalar_lea.vmem %s2, %s422
        %p424 = pneg %p107
        %p425 = pneg %p104
        %p426 = scmp.lt.s32.totalorder %s34, 1
        %s427 = scalar_select %p426, %s34, 1
        %s428 = smul.addr %s427, 2
        %s429 = smul.addr %s428, 2
        %s430 = scalar_lea.vmem %s3, %s429
        %p431 = pneg %p133
        %p432 = pneg %p130
        %p433 = pneg %p154
        %p434 = pneg %p151
        %p435 = pneg %p175
        %p436 = pneg %p172
        %p437 = pneg %p196
        %p438 = pneg %p193
        %p439 = pneg %p217
        %p440 = pneg %p214
        %p441 = pneg %p243
        %p442 = pneg %p240
        %s443 = sand.u32 %s230, 1
        %s444 = scalar_lea.sflag [#allocation5], %s443
        %s445 = sand.u32 %s230, 1
        %s446 = smul.addr %s445, 16
        %s447 = scalar_lea.vmem [#allocation11], %s446
        %p448 = pneg %p269
        %p449 = pneg %p266
        %s450 = sand.u32 %s256, 1
        %s451 = scalar_lea.sflag [#allocation13], %s450
        %s452 = sand.u32 %s256, 1
        %s453 = smul.addr %s452, 2
        %s454 = scalar_lea.vmem [#allocation12], %s453
        %p455 = scmp.lt.s32.totalorder %s34, 1
        %s456 = scalar_select %p455, %s34, 1
        %s457 = smul.addr %s456, 2
        %s458 = smul.addr %s457, 2
        %s459 = scalar_lea.vmem %s2, %s458
        %p460 = scmp.lt.s32.totalorder %s34, 1
        %s461 = scalar_select %p460, %s34, 1
        %s462 = smul.addr %s461, 2
        %s463 = smul.addr %s462, 2
        %s464 = scalar_lea.vmem %s3, %s463
        %466 = vst [vmem:[#allocation2] sm:$0xf] 0
        %vm467 = vcmask 1040384
        %vm468 = vsmask.f32 256
        %vm469 = vmand %vm467, %vm468
        %v470 = vld [vmem:[#allocation2 + $0x10] sm:$0x1]
        %v471 = vsel %vm469, 0, %v470
        %472 = vst [vmem:[#allocation2 + $0x10] sm:$0x1] %v471
        %473 = vst [vmem:[#allocation2 + $0xc] sm:$0xf] 0
        %v474 = vld [vmem:[#allocation2 + $0x1c] sm:$0x1]
        %v475 = vsel %vm469, 0, %v474
        %476 = vst [vmem:[#allocation2 + $0x1c] sm:$0x1] %v475
        %v477 = vld [vmem:[%s383] sm:$0x3]
        %v478 = vld [vmem:[%s392] sm:$0x3]
        %v479 = vmul.bf16 %v477, %v478
        %v480 = vunpack.c.l.bf16 %v478
        %vm481 = vcmask 519168
        %v482 = vsel %vm481, %v480, 0.0
        %v483 = vrot.slane %v482, 4
        %v484 = vadd.f32 %v482, %v483
        %v485 = vrot.slane %v484, 2
        %v486 = vadd.f32 %v484, %v485
        %v487 = vrot.slane %v486, 1
        %v488 = vadd.f32 %v486, %v487
        %v489 = vpack.c.bf16 %v488, %v488
        %vm490 = vcmask 1041408
        %v493 = vsel %vm490, %v479, %v489
        %v494 = vld [vmem:[#allocation8] sm:$0xff]
        %v495 = vld [vmem:[#allocation8 + $0x8] sm:$0xff]
        %v496 = vld [vmem:[#allocation8 + $0x10] sm:$0xff]
        %v497 = vld [vmem:[#allocation8 + $0x18] sm:$0xff]
        %v498 = vld [vmem:[#allocation8 + $0x20] sm:$0xff]
        %v499 = vld [vmem:[#allocation8 + $0x28] sm:$0xff]
        %v500 = vld [vmem:[#allocation8 + $0x30] sm:$0xff]
        %v501 = vld [vmem:[#allocation8 + $0x38] sm:$0xff]
        %v510 = vunpack.c.l.b16 %v494
        %v511 = vunpack.c.h.b16 %v494
        %v512 = vunpack.c.l.b16 %v495
        %v513 = vunpack.c.h.b16 %v495
        %v514 = vunpack.c.l.b16 %v496
        %v515 = vunpack.c.h.b16 %v496
        %v516 = vunpack.c.l.b16 %v497
        %v517 = vunpack.c.h.b16 %v497
        %v518 = vunpack.c.l.b16 %v498
        %v519 = vunpack.c.h.b16 %v498
        %v520 = vunpack.c.l.b16 %v499
        %v521 = vunpack.c.h.b16 %v499
        %v522 = vunpack.c.l.b16 %v500
        %v523 = vunpack.c.h.b16 %v500
        %v524 = vunpack.c.l.b16 %v501
        %v525 = vunpack.c.h.b16 %v501
        %v526 = vpack.c.b16 %v512, %v510
        %v527 = vpack.c.b16 %v513, %v511
        %v528 = vpack.c.b16 %v516, %v514
        %v529 = vpack.c.b16 %v517, %v515
        %v530 = vpack.c.b16 %v520, %v518
        %v531 = vpack.c.b16 %v521, %v519
        %v532 = vpack.c.b16 %v524, %v522
        %v533 = vpack.c.b16 %v525, %v523
        %vm542 = vcmask 523264
        %v543 = vsel %vm542, %v493, 0
        %545 = vmatprep.subr.bf16.mxu0 %v527
        %546 = vmatpush1.bf16.msra.mxu0 %v526
        %547 = vmatprep.subr.bf16.mxu0 %v529
        %548 = vmatpush1.bf16.msra.mxu0 %v528
        %549 = vmatprep.subr.bf16.mxu0 %v531
        %550 = vmatpush1.bf16.msra.mxu0 %v530
        %551 = vmatprep.subr.bf16.mxu0 %v533
        %552 = vmatpush1.bf16.msra.mxu0 %v532
        %553 = vmatprep.subr.bf16.mxu0 0
        %554 = vmatpush1.bf16.msra.mxu0 0
        %555 = vmatprep.subr.bf16.mxu0 0
        %556 = vmatpush1.bf16.msra.mxu0 0
        %557 = vmatprep.subr.bf16.mxu0 0
        %558 = vmatpush1.bf16.msra.mxu0 0
        %559 = vmatprep.subr.bf16.mxu0 0
        %560 = vmatpush1.bf16.msra.mxu0 0
        %561 = vmatprep.subr.bf16.mxu0 0
        %562 = vmatpush1.bf16.msra.mxu0 0
        %563 = vmatprep.subr.bf16.mxu0 0
        %564 = vmatpush1.bf16.msra.mxu0 0
        %565 = vmatprep.subr.bf16.mxu0 0
        %566 = vmatpush1.bf16.msra.mxu0 0
        %567 = vmatprep.subr.bf16.mxu0 0
        %568 = vmatpush1.bf16.msra.mxu0 0
        %569 = vmatprep.subr.bf16.mxu0 0
        %570 = vmatpush1.bf16.msra.mxu0 0
        %571 = vmatprep.subr.bf16.mxu0 0
        %572 = vmatpush1.bf16.msra.mxu0 0
        %573 = vmatprep.subr.bf16.mxu0 0
        %574 = vmatpush1.bf16.msra.mxu0 0
        %575 = vmatprep.subr.bf16.mxu0 0
        %576 = vmatpush1.bf16.msra.mxu0 0
        %577 = vmatprep.mubr.bf16.mxu0 0
        %578 = vmatmul.mubr.bf16.gmra.mrb[0].mxu0 %v543
        %v579 = vpop.f32.mrb[0].mxu0
        %v580 = vadd.f32 0.0, %v579
        %v581 = vpop.f32.mrb[0].mxu0
        %v582 = vadd.f32 0.0, %v581
        %v583 = vpop.f32.mrb[0].mxu0
        %v584 = vpop.f32.mrb[0].mxu0
        %585 = vdwg.mxu0
        %v586 = vld [vmem:[%s459] sm:$0xf]
        %v587 = vld [vmem:[%s464] sm:$0xf]
        %v588 = vmul.bf16 %v586, %v587
        %v589 = vunpack.c.l.bf16 %v587
        %v591 = vcombine.high %v589, %v589
        %vm593 = vcmask 1043456
        %v594 = vsel %vm593, %v589, 0.0
        %v595 = vrot.slane %v594, 4
        %v596 = vadd.f32 %v594, %v595
        %v597 = vrot.slane %v596, 2
        %v598 = vadd.f32 %v596, %v597
        %v599 = vrot.slane %v598, 1
        %v600 = vadd.f32 %v598, %v599
        %v601 = vsel %vm593, %v591, 0.0
        %v602 = vrot.slane %v601, 4
        %v603 = vadd.f32 %v601, %v602
        %v604 = vrot.slane %v603, 2
        %v605 = vadd.f32 %v603, %v604
        %v606 = vrot.slane %v605, 1
        %v607 = vadd.f32 %v605, %v606
        %v608 = vpack.c.bf16 %v580, %v580
        %v609 = vpack.c.bf16 %v582, %v582
        %v612 = vunpack.c.l.b16 %v608
        %v613 = vunpack.c.l.b16 %v609
        %v614 = vpack.c.b16 %v613, %v612
        %616 = vst [vmem:[#allocation2 + $0x4] sm:$0x33] %v614
        %v618 = vcombine.low %v588, %v588
        %v620 = vunpack.c.l.s4 1983009808
        %v621 = vunpack.c.0.s8 %v620
        %v622 = vlaneseq
        %v623 = vshrl.u32 %v622, 7
        %v624 = vsub.s32 %v621, %v623
        %v625 = vrot.slane %v618, %v624
        %627 = vst [vmem:[#allocation2 + $0x4] sm:$0xcc] %v625
        %v628 = vadd.f32 %v580, %v600
        %v629 = vadd.f32 %v582, %v607
        %v630 = vpack.c.bf16 %v628, %v628
        %v631 = vpack.c.bf16 %v629, %v629
        %v634 = vunpack.c.l.b16 %v630
        %v635 = vunpack.c.l.b16 %v631
        %v636 = vpack.c.b16 %v635, %v634
        %v637 = vrot.slane %v636, 6
        %v638 = vrot.slane %v637, 4
        %vm640 = vcmask 1044484
        %vm641 = vsmask.f32 4352
        %vm642 = vmand %vm640, %vm641
        %vm643 = vmor %vm642, %vm469
        %v644 = vld [vmem:[#allocation2 + $0x14] sm:$0x11]
        %v645 = vsel %vm643, %v638, %v644
        %646 = vst [vmem:[#allocation2 + $0x14] sm:$0x11] %v645
        %v647 = vld [vmem:[#allocation9] sm:$0xf]
        %v648 = vld [vmem:[#allocation9 + $0x4] sm:$0x1]
        %v649 = vld [vmem:[#allocation2] sm:$0xff]
        %v650 = vld [vmem:[#allocation2 + $0x8] sm:$0xf]
        %v651 = vld [vmem:[#allocation2 + $0x10] sm:$0x11]
        %v652 = vld [vmem:[#allocation2 + $0x18] sm:$0x1]
        %s653 = scalar_lea.vmem [#allocation9], 24
        %v654 = vld [vmem:[%s653] sm:$0xf]
        %v655 = vld [vmem:[%s653 + $0x4] sm:$0x1]
        %v658 = vunpack.c.l.b16 %v654
        %v659 = vunpack.c.l.b16 %v655
        %v660 = vpack.c.b16 %v659, %v658
        %v665 = vunpack.c.l.b16 %v649
        %v666 = vunpack.c.h.b16 %v649
        %v667 = vunpack.c.l.b16 %v650
        %v668 = vunpack.c.l.b16 %v651
        %v669 = vunpack.c.h.b16 %v651
        %v670 = vunpack.c.l.b16 %v652
        %v671 = vpack.c.b16 %v668, %v665
        %v672 = vpack.c.b16 %v669, %v666
        %v673 = vpack.c.b16 %v670, %v667
        %674 = vrot.lane.b32.xlu0 %v671, 1
        %v675 = vpop.permute.xlu0 %674
        %676 = vrot.lane.b32.xlu0 %v672, 1
        %v677 = vpop.permute.xlu0 %676
        %678 = vrot.lane.b32.xlu0 %v673, 1
        %v679 = vpop.permute.xlu0 %678
        %vm680 = vcmask 7168
        %v681 = vsel %vm680, %v675, %v677
        %v682 = vsel %vm680, %v677, %v679
        %vm683 = vcmask 72704
        %v685 = vsel %vm683, %v660, 0
        %vm687 = vcmask 1044480
        %v688 = vsel %vm593, 4294967295, 65535
        %v689 = vsel %vm687, %v688, 0
        %v691 = vand.u32 %v681, %v689
        %v694 = vand.u32 %v682, %v689
        %696 = vmatprep.subr.bf16.mxu0 %v694
        %697 = vmatpush1.bf16.msra.mxu0 %v691
        %698 = vmatprep.subr.bf16.mxu0 0
        %699 = vmatpush1.bf16.msra.mxu0 0
        %700 = vmatprep.subr.bf16.mxu0 0
        %701 = vmatpush1.bf16.msra.mxu0 0
        %702 = vmatprep.subr.bf16.mxu0 0
        %703 = vmatpush1.bf16.msra.mxu0 0
        %704 = vmatprep.subr.bf16.mxu0 0
        %705 = vmatpush1.bf16.msra.mxu0 0
        %706 = vmatprep.subr.bf16.mxu0 0
        %707 = vmatpush1.bf16.msra.mxu0 0
        %708 = vmatprep.subr.bf16.mxu0 0
        %709 = vmatpush1.bf16.msra.mxu0 0
        %710 = vmatprep.subr.bf16.mxu0 0
        %711 = vmatpush1.bf16.msra.mxu0 0
        %712 = vmatprep.subr.bf16.mxu0 0
        %713 = vmatpush1.bf16.msra.mxu0 0
        %714 = vmatprep.subr.bf16.mxu0 0
        %715 = vmatpush1.bf16.msra.mxu0 0
        %716 = vmatprep.subr.bf16.mxu0 0
        %717 = vmatpush1.bf16.msra.mxu0 0
        %718 = vmatprep.subr.bf16.mxu0 0
        %719 = vmatpush1.bf16.msra.mxu0 0
        %720 = vmatprep.subr.bf16.mxu0 0
        %721 = vmatpush1.bf16.msra.mxu0 0
        %722 = vmatprep.subr.bf16.mxu0 0
        %723 = vmatpush1.bf16.msra.mxu0 0
        %724 = vmatprep.subr.bf16.mxu0 0
        %725 = vmatpush1.bf16.msra.mxu0 0
        %726 = vmatprep.subr.bf16.mxu0 0
        %727 = vmatpush1.bf16.msra.mxu0 0
        %728 = vmatprep.mubr.bf16.mxu0 0
        %729 = vmatmul.mubr.bf16.gmra.mrb[0].mxu0 %v685
        %v730 = vpop.f32.mrb[0].mxu0
        %v731 = vadd.f32 0.0, %v730
        %v732 = vpop.f32.mrb[0].mxu0
        %v733 = vadd.f32 0.0, %v732
        %v734 = vpop.f32.mrb[0].mxu0
        %v735 = vadd.f32 0.0, %v734
        %v736 = vpop.f32.mrb[0].mxu0
        %v737 = vadd.f32 0.0, %v736
        %738 = vdwg.mxu0
        %v741 = vunpack.c.l.b16 %v647
        %v742 = vunpack.c.l.b16 %v648
        %v743 = vpack.c.b16 %v742, %v741
        %744 = vrot.lane.b32.xlu0 %v671, 17
        %v745 = vpop.permute.xlu0 %744
        %746 = vrot.lane.b32.xlu0 %v672, 17
        %v747 = vpop.permute.xlu0 %746
        %748 = vrot.lane.b32.xlu0 %v673, 17
        %v749 = vpop.permute.xlu0 %748
        %vm750 = vcmask 138240
        %v751 = vsel %vm750, %v745, %v747
        %v752 = vsel %vm750, %v747, %v749
        %v754 = vsel %vm683, %v743, 0
        %v757 = vand.u32 %v751, %v689
        %v760 = vand.u32 %v752, %v689
        %762 = vmatprep.subr.bf16.mxu0 %v760
        %763 = vmatpush1.bf16.msra.mxu0 %v757
        %764 = vmatprep.subr.bf16.mxu0 0
        %765 = vmatpush1.bf16.msra.mxu0 0
        %766 = vmatprep.subr.bf16.mxu0 0
        %767 = vmatpush1.bf16.msra.mxu0 0
        %768 = vmatprep.subr.bf16.mxu0 0
        %769 = vmatpush1.bf16.msra.mxu0 0
        %770 = vmatprep.subr.bf16.mxu0 0
        %771 = vmatpush1.bf16.msra.mxu0 0
        %772 = vmatprep.subr.bf16.mxu0 0
        %773 = vmatpush1.bf16.msra.mxu0 0
        %774 = vmatprep.subr.bf16.mxu0 0
        %775 = vmatpush1.bf16.msra.mxu0 0
        %776 = vmatprep.subr.bf16.mxu0 0
        %777 = vmatpush1.bf16.msra.mxu0 0
        %778 = vmatprep.subr.bf16.mxu0 0
        %779 = vmatpush1.bf16.msra.mxu0 0
        %780 = vmatprep.subr.bf16.mxu0 0
        %781 = vmatpush1.bf16.msra.mxu0 0
        %782 = vmatprep.subr.bf16.mxu0 0
        %783 = vmatpush1.bf16.msra.mxu0 0
        %784 = vmatprep.subr.bf16.mxu0 0
        %785 = vmatpush1.bf16.msra.mxu0 0
        %786 = vmatprep.subr.bf16.mxu0 0
        %787 = vmatpush1.bf16.msra.mxu0 0
        %788 = vmatprep.subr.bf16.mxu0 0
        %789 = vmatpush1.bf16.msra.mxu0 0
        %790 = vmatprep.subr.bf16.mxu0 0
        %791 = vmatpush1.bf16.msra.mxu0 0
        %792 = vmatprep.subr.bf16.mxu0 0
        %793 = vmatpush1.bf16.msra.mxu0 0
        %794 = vmatprep.mubr.bf16.mxu0 0
        %795 = vmatmul.mubr.bf16.gmra.mrb[0].mxu0 %v754
        %v796 = vpop.f32.mrb[0].mxu0
        %v797 = vadd.f32 %v731, %v796
        %v798 = vpop.f32.mrb[0].mxu0
        %v799 = vadd.f32 %v733, %v798
        %v800 = vpop.f32.mrb[0].mxu0
        %v801 = vadd.f32 %v735, %v800
        %v802 = vpop.f32.mrb[0].mxu0
        %v803 = vadd.f32 %v737, %v802
        %804 = vdwg.mxu0
        %s805 = scalar_lea.vmem [#allocation9], 48
        %v806 = vld [vmem:[%s805] sm:$0xf]
        %v807 = vld [vmem:[%s805 + $0x4] sm:$0x1]
        %v808 = vld [vmem:[#allocation2 + $0x4] sm:$0xff]
        %v809 = vld [vmem:[#allocation2 + $0xc] sm:$0xf]
        %v810 = vld [vmem:[#allocation2 + $0x14] sm:$0x11]
        %v811 = vld [vmem:[#allocation2 + $0x1c] sm:$0x1]
        %v814 = vunpack.c.l.b16 %v806
        %v815 = vunpack.c.l.b16 %v807
        %v816 = vpack.c.b16 %v815, %v814
        %v821 = vunpack.c.l.b16 %v808
        %v822 = vunpack.c.h.b16 %v808
        %v823 = vunpack.c.l.b16 %v809
        %v824 = vunpack.c.l.b16 %v810
        %v825 = vunpack.c.h.b16 %v810
        %v826 = vunpack.c.l.b16 %v811
        %v827 = vpack.c.b16 %v824, %v821
        %v828 = vpack.c.b16 %v825, %v822
        %v829 = vpack.c.b16 %v826, %v823
        %830 = vrot.lane.b32.xlu0 %v827, 113
        %v831 = vpop.permute.xlu0 %830
        %832 = vrot.lane.b32.xlu0 %v828, 113
        %v833 = vpop.permute.xlu0 %832
        %834 = vrot.lane.b32.xlu0 %v829, 113
        %v835 = vpop.permute.xlu0 %834
        %vm836 = vcmask 924672
        %v837 = vsel %vm836, %v831, %v833
        %v838 = vsel %vm836, %v833, %v835
        %v840 = vsel %vm683, %v816, 0
        %v843 = vand.u32 %v837, %v689
        %v846 = vand.u32 %v838, %v689
        %848 = vmatprep.subr.bf16.mxu0 %v846
        %849 = vmatpush1.bf16.msra.mxu0 %v843
        %850 = vmatprep.subr.bf16.mxu0 0
        %851 = vmatpush1.bf16.msra.mxu0 0
        %852 = vmatprep.subr.bf16.mxu0 0
        %853 = vmatpush1.bf16.msra.mxu0 0
        %854 = vmatprep.subr.bf16.mxu0 0
        %855 = vmatpush1.bf16.msra.mxu0 0
        %856 = vmatprep.subr.bf16.mxu0 0
        %857 = vmatpush1.bf16.msra.mxu0 0
        %858 = vmatprep.subr.bf16.mxu0 0
        %859 = vmatpush1.bf16.msra.mxu0 0
        %860 = vmatprep.subr.bf16.mxu0 0
        %861 = vmatpush1.bf16.msra.mxu0 0
        %862 = vmatprep.subr.bf16.mxu0 0
        %863 = vmatpush1.bf16.msra.mxu0 0
        %864 = vmatprep.subr.bf16.mxu0 0
        %865 = vmatpush1.bf16.msra.mxu0 0
        %866 = vmatprep.subr.bf16.mxu0 0
        %867 = vmatpush1.bf16.msra.mxu0 0
        %868 = vmatprep.subr.bf16.mxu0 0
        %869 = vmatpush1.bf16.msra.mxu0 0
        %870 = vmatprep.subr.bf16.mxu0 0
        %871 = vmatpush1.bf16.msra.mxu0 0
        %872 = vmatprep.subr.bf16.mxu0 0
        %873 = vmatpush1.bf16.msra.mxu0 0
        %874 = vmatprep.subr.bf16.mxu0 0
        %875 = vmatpush1.bf16.msra.mxu0 0
        %876 = vmatprep.subr.bf16.mxu0 0
        %877 = vmatpush1.bf16.msra.mxu0 0
        %878 = vmatprep.subr.bf16.mxu0 0
        %879 = vmatpush1.bf16.msra.mxu0 0
        %880 = vmatprep.mubr.bf16.mxu0 0
        %881 = vmatmul.mubr.bf16.gmra.mrb[0].mxu0 %v840
        %v882 = vpop.f32.mrb[0].mxu0
        %v883 = vadd.f32 0.0, %v882
        %v884 = vpop.f32.mrb[0].mxu0
        %v885 = vadd.f32 0.0, %v884
        %v886 = vpop.f32.mrb[0].mxu0
        %v887 = vadd.f32 0.0, %v886
        %v888 = vpop.f32.mrb[0].mxu0
        %v889 = vadd.f32 0.0, %v888
        %890 = vdwg.mxu0
        %v891 = vadd.f32 %v797, %v883
        %v892 = vadd.f32 %v799, %v885
        %v893 = vadd.f32 %v801, %v887
        %v894 = vadd.f32 %v803, %v889
        %v895 = vld [vmem:[%s5] ss:$4 sm:$0x3]
        %v897 = vlaneseq
        %v898 = vshrl.u32 %v897, 7
        %v899 = vsub.s32 0, %v898
        %v900 = vrot.slane %v895, %v899
        %v901 = vlaneseq
        %v902 = vshrl.u32 %v901, 7
        %v903 = vsub.s32 1, %v902
        %v904 = vrot.slane %v895, %v903
        %v907 = vmul.f32 %v891, %v900
        %v908 = vmul.f32 %v892, %v904
        %v909 = vmul.f32 %v893, %v900
        %v910 = vmul.f32 %v894, %v904
        %v911 = vadd.f32 %v907, 0.0
        %v912 = vadd.f32 %v908, 0.0
        %v913 = vadd.f32 %v909, 0.0
        %v914 = vadd.f32 %v910, 0.0
        %s915 = scalar_lea.vmem [#allocation9], 8
        %v916 = vld [vmem:[%s915] sm:$0xf]
        %v917 = vld [vmem:[%s915 + $0x4] sm:$0x1]
        %s918 = scalar_lea.vmem [#allocation9], 32
        %v919 = vld [vmem:[%s918] sm:$0xf]
        %v920 = vld [vmem:[%s918 + $0x4] sm:$0x1]
        %v921 = vld [vmem:[#allocation2 + $0x4] sm:$0xff]
        %v922 = vld [vmem:[#allocation2 + $0x14] sm:$0x11]
        %v925 = vunpack.c.l.b16 %v919
        %v926 = vunpack.c.l.b16 %v920
        %v927 = vpack.c.b16 %v926, %v925
        %v930 = vunpack.c.l.b16 %v921
        %v931 = vunpack.c.h.b16 %v921
        %v932 = vunpack.c.l.b16 %v922
        %v933 = vunpack.c.h.b16 %v922
        %v934 = vpack.c.b16 %v932, %v930
        %v935 = vpack.c.b16 %v933, %v931
        %v937 = vsel %vm683, %v927, 0
        %v940 = vand.u32 %v934, %v689
        %v943 = vand.u32 %v935, %v689
        %945 = vmatprep.subr.bf16.mxu0 %v943
        %946 = vmatpush1.bf16.msra.mxu0 %v940
        %947 = vmatprep.subr.bf16.mxu0 0
        %948 = vmatpush1.bf16.msra.mxu0 0
        %949 = vmatprep.subr.bf16.mxu0 0
        %950 = vmatpush1.bf16.msra.mxu0 0
        %951 = vmatprep.subr.bf16.mxu0 0
        %952 = vmatpush1.bf16.msra.mxu0 0
        %953 = vmatprep.subr.bf16.mxu0 0
        %954 = vmatpush1.bf16.msra.mxu0 0
        %955 = vmatprep.subr.bf16.mxu0 0
        %956 = vmatpush1.bf16.msra.mxu0 0
        %957 = vmatprep.subr.bf16.mxu0 0
        %958 = vmatpush1.bf16.msra.mxu0 0
        %959 = vmatprep.subr.bf16.mxu0 0
        %960 = vmatpush1.bf16.msra.mxu0 0
        %961 = vmatprep.subr.bf16.mxu0 0
        %962 = vmatpush1.bf16.msra.mxu0 0
        %963 = vmatprep.subr.bf16.mxu0 0
        %964 = vmatpush1.bf16.msra.mxu0 0
        %965 = vmatprep.subr.bf16.mxu0 0
        %966 = vmatpush1.bf16.msra.mxu0 0
        %967 = vmatprep.subr.bf16.mxu0 0
        %968 = vmatpush1.bf16.msra.mxu0 0
        %969 = vmatprep.subr.bf16.mxu0 0
        %970 = vmatpush1.bf16.msra.mxu0 0
        %971 = vmatprep.subr.bf16.mxu0 0
        %972 = vmatpush1.bf16.msra.mxu0 0
        %973 = vmatprep.subr.bf16.mxu0 0
        %974 = vmatpush1.bf16.msra.mxu0 0
        %975 = vmatprep.subr.bf16.mxu0 0
        %976 = vmatpush1.bf16.msra.mxu0 0
        %977 = vmatprep.mubr.bf16.mxu0 0
        %978 = vmatmul.mubr.bf16.gmra.mrb[0].mxu0 %v937
        %v979 = vpop.f32.mrb[0].mxu0
        %v980 = vadd.f32 0.0, %v979
        %v981 = vpop.f32.mrb[0].mxu0
        %v982 = vadd.f32 0.0, %v981
        %v983 = vpop.f32.mrb[0].mxu0
        %v984 = vadd.f32 0.0, %v983
        %v985 = vpop.f32.mrb[0].mxu0
        %v986 = vadd.f32 0.0, %v985
        %987 = vdwg.mxu0
        %v990 = vunpack.c.l.b16 %v916
        %v991 = vunpack.c.l.b16 %v917
        %v992 = vpack.c.b16 %v991, %v990
        %993 = vrot.lane.b32.xlu0 %v671, 16
        %v994 = vpop.permute.xlu0 %993
        %995 = vrot.lane.b32.xlu0 %v672, 16
        %v996 = vpop.permute.xlu0 %995
        %997 = vrot.lane.b32.xlu0 %v673, 16
        %v998 = vpop.permute.xlu0 %997
        %vm999 = vcmask 130048
        %v1000 = vsel %vm999, %v994, %v996
        %v1001 = vsel %vm999, %v996, %v998
        %v1003 = vsel %vm683, %v992, 0
        %v1006 = vand.u32 %v1000, %v689
        %v1009 = vand.u32 %v1001, %v689
        %1011 = vmatprep.subr.bf16.mxu0 %v1009
        %1012 = vmatpush1.bf16.msra.mxu0 %v1006
        %1013 = vmatprep.subr.bf16.mxu0 0
        %1014 = vmatpush1.bf16.msra.mxu0 0
        %1015 = vmatprep.subr.bf16.mxu0 0
        %1016 = vmatpush1.bf16.msra.mxu0 0
        %1017 = vmatprep.subr.bf16.mxu0 0
        %1018 = vmatpush1.bf16.msra.mxu0 0
        %1019 = vmatprep.subr.bf16.mxu0 0
        %1020 = vmatpush1.bf16.msra.mxu0 0
        %1021 = vmatprep.subr.bf16.mxu0 0
        %1022 = vmatpush1.bf16.msra.mxu0 0
        %1023 = vmatprep.subr.bf16.mxu0 0
        %1024 = vmatpush1.bf16.msra.mxu0 0
        %1025 = vmatprep.subr.bf16.mxu0 0
        %1026 = vmatpush1.bf16.msra.mxu0 0
        %1027 = vmatprep.subr.bf16.mxu0 0
        %1028 = vmatpush1.bf16.msra.mxu0 0
        %1029 = vmatprep.subr.bf16.mxu0 0
        %1030 = vmatpush1.bf16.msra.mxu0 0
        %1031 = vmatprep.subr.bf16.mxu0 0
        %1032 = vmatpush1.bf16.msra.mxu0 0
        %1033 = vmatprep.subr.bf16.mxu0 0
        %1034 = vmatpush1.bf16.msra.mxu0 0
        %1035 = vmatprep.subr.bf16.mxu0 0
        %1036 = vmatpush1.bf16.msra.mxu0 0
        %1037 = vmatprep.subr.bf16.mxu0 0
        %1038 = vmatpush1.bf16.msra.mxu0 0
        %1039 = vmatprep.subr.bf16.mxu0 0
        %1040 = vmatpush1.bf16.msra.mxu0 0
        %1041 = vmatprep.subr.bf16.mxu0 0
        %1042 = vmatpush1.bf16.msra.mxu0 0
        %1043 = vmatprep.mubr.bf16.mxu0 0
        %1044 = vmatmul.mubr.bf16.gmra.mrb[0].mxu0 %v1003
        %v1045 = vpop.f32.mrb[0].mxu0
        %v1046 = vadd.f32 %v980, %v1045
        %v1047 = vpop.f32.mrb[0].mxu0
        %v1048 = vadd.f32 %v982, %v1047
        %v1049 = vpop.f32.mrb[0].mxu0
        %v1050 = vadd.f32 %v984, %v1049
        %v1051 = vpop.f32.mrb[0].mxu0
        %v1052 = vadd.f32 %v986, %v1051
        %1053 = vdwg.mxu0
        %s1054 = scalar_lea.vmem [#allocation9], 56
        %v1055 = vld [vmem:[%s1054] sm:$0xf]
        %v1056 = vld [vmem:[%s1054 + $0x4] sm:$0x1]
        %v1059 = vunpack.c.l.b16 %v1055
        %v1060 = vunpack.c.l.b16 %v1056
        %v1061 = vpack.c.b16 %v1060, %v1059
        %1062 = vrot.lane.b32.xlu0 %v827, 112
        %v1063 = vpop.permute.xlu0 %1062
        %1064 = vrot.lane.b32.xlu0 %v828, 112
        %v1065 = vpop.permute.xlu0 %1064
        %1066 = vrot.lane.b32.xlu0 %v829, 112
        %v1067 = vpop.permute.xlu0 %1066
        %vm1068 = vcmask 916480
        %v1069 = vsel %vm1068, %v1063, %v1065
        %v1070 = vsel %vm1068, %v1065, %v1067
        %v1072 = vsel %vm683, %v1061, 0
        %v1075 = vand.u32 %v1069, %v689
        %v1078 = vand.u32 %v1070, %v689
        %1080 = vmatprep.subr.bf16.mxu0 %v1078
        %1081 = vmatpush1.bf16.msra.mxu0 %v1075
        %1082 = vmatprep.subr.bf16.mxu0 0
        %1083 = vmatpush1.bf16.msra.mxu0 0
        %1084 = vmatprep.subr.bf16.mxu0 0
        %1085 = vmatpush1.bf16.msra.mxu0 0
        %1086 = vmatprep.subr.bf16.mxu0 0
        %1087 = vmatpush1.bf16.msra.mxu0 0
        %1088 = vmatprep.subr.bf16.mxu0 0
        %1089 = vmatpush1.bf16.msra.mxu0 0
        %1090 = vmatprep.subr.bf16.mxu0 0
        %1091 = vmatpush1.bf16.msra.mxu0 0
        %1092 = vmatprep.subr.bf16.mxu0 0
        %1093 = vmatpush1.bf16.msra.mxu0 0
        %1094 = vmatprep.subr.bf16.mxu0 0
        %1095 = vmatpush1.bf16.msra.mxu0 0
        %1096 = vmatprep.subr.bf16.mxu0 0
        %1097 = vmatpush1.bf16.msra.mxu0 0
        %1098 = vmatprep.subr.bf16.mxu0 0
        %1099 = vmatpush1.bf16.msra.mxu0 0
        %1100 = vmatprep.subr.bf16.mxu0 0
        %1101 = vmatpush1.bf16.msra.mxu0 0
        %1102 = vmatprep.subr.bf16.mxu0 0
        %1103 = vmatpush1.bf16.msra.mxu0 0
        %1104 = vmatprep.subr.bf16.mxu0 0
        %1105 = vmatpush1.bf16.msra.mxu0 0
        %1106 = vmatprep.subr.bf16.mxu0 0
        %1107 = vmatpush1.bf16.msra.mxu0 0
        %1108 = vmatprep.subr.bf16.mxu0 0
        %1109 = vmatpush1.bf16.msra.mxu0 0
        %1110 = vmatprep.subr.bf16.mxu0 0
        %1111 = vmatpush1.bf16.msra.mxu0 0
        %1112 = vmatprep.mubr.bf16.mxu0 0
        %1113 = vmatmul.mubr.bf16.gmra.mrb[0].mxu0 %v1072
        %v1114 = vpop.f32.mrb[0].mxu0
        %v1115 = vadd.f32 0.0, %v1114
        %v1116 = vpop.f32.mrb[0].mxu0
        %v1117 = vadd.f32 0.0, %v1116
        %v1118 = vpop.f32.mrb[0].mxu0
        %v1119 = vadd.f32 0.0, %v1118
        %v1120 = vpop.f32.mrb[0].mxu0
        %v1121 = vadd.f32 0.0, %v1120
        %1122 = vdwg.mxu0
        %v1123 = vadd.f32 %v1046, %v1115
        %v1124 = vadd.f32 %v1048, %v1117
        %v1125 = vadd.f32 %v1050, %v1119
        %v1126 = vadd.f32 %v1052, %v1121
        %v1127 = vadd.f32 %v911, %v1123
        %v1128 = vadd.f32 %v912, %v1124
        %v1129 = vadd.f32 %v913, %v1125
        %v1130 = vadd.f32 %v914, %v1126
        %s1131 = scalar_lea.vmem [#allocation9], 16
        %v1132 = vld [vmem:[%s1131] sm:$0xf]
        %v1133 = vld [vmem:[%s1131 + $0x4] sm:$0x1]
        %s1134 = scalar_lea.vmem [#allocation9], 40
        %v1135 = vld [vmem:[%s1134] sm:$0xf]
        %v1136 = vld [vmem:[%s1134 + $0x4] sm:$0x1]
        %v1139 = vunpack.c.l.b16 %v1135
        %v1140 = vunpack.c.l.b16 %v1136
        %v1141 = vpack.c.b16 %v1140, %v1139
        %1142 = vrot.lane.b32.xlu0 %v827, 127
        %v1143 = vpop.permute.xlu0 %1142
        %1144 = vrot.lane.b32.xlu0 %v828, 127
        %v1145 = vpop.permute.xlu0 %1144
        %1146 = vrot.lane.b32.xlu0 %v829, 127
        %v1147 = vpop.permute.xlu0 %1146
        %vm1148 = vcmask 1039360
        %v1149 = vsel %vm1148, %v1143, %v1145
        %v1150 = vsel %vm1148, %v1145, %v1147
        %v1152 = vsel %vm683, %v1141, 0
        %v1155 = vand.u32 %v1149, %v689
        %v1158 = vand.u32 %v1150, %v689
        %1160 = vmatprep.subr.bf16.mxu0 %v1158
        %1161 = vmatpush1.bf16.msra.mxu0 %v1155
        %1162 = vmatprep.subr.bf16.mxu0 0
        %1163 = vmatpush1.bf16.msra.mxu0 0
        %1164 = vmatprep.subr.bf16.mxu0 0
        %1165 = vmatpush1.bf16.msra.mxu0 0
        %1166 = vmatprep.subr.bf16.mxu0 0
        %1167 = vmatpush1.bf16.msra.mxu0 0
        %1168 = vmatprep.subr.bf16.mxu0 0
        %1169 = vmatpush1.bf16.msra.mxu0 0
        %1170 = vmatprep.subr.bf16.mxu0 0
        %1171 = vmatpush1.bf16.msra.mxu0 0
        %1172 = vmatprep.subr.bf16.mxu0 0
        %1173 = vmatpush1.bf16.msra.mxu0 0
        %1174 = vmatprep.subr.bf16.mxu0 0
        %1175 = vmatpush1.bf16.msra.mxu0 0
        %1176 = vmatprep.subr.bf16.mxu0 0
        %1177 = vmatpush1.bf16.msra.mxu0 0
        %1178 = vmatprep.subr.bf16.mxu0 0
        %1179 = vmatpush1.bf16.msra.mxu0 0
        %1180 = vmatprep.subr.bf16.mxu0 0
        %1181 = vmatpush1.bf16.msra.mxu0 0
        %1182 = vmatprep.subr.bf16.mxu0 0
        %1183 = vmatpush1.bf16.msra.mxu0 0
        %1184 = vmatprep.subr.bf16.mxu0 0
        %1185 = vmatpush1.bf16.msra.mxu0 0
        %1186 = vmatprep.subr.bf16.mxu0 0
        %1187 = vmatpush1.bf16.msra.mxu0 0
        %1188 = vmatprep.subr.bf16.mxu0 0
        %1189 = vmatpush1.bf16.msra.mxu0 0
        %1190 = vmatprep.subr.bf16.mxu0 0
        %1191 = vmatpush1.bf16.msra.mxu0 0
        %1192 = vmatprep.mubr.bf16.mxu0 0
        %1193 = vmatmul.mubr.bf16.gmra.mrb[0].mxu0 %v1152
        %v1194 = vpop.f32.mrb[0].mxu0
        %v1195 = vadd.f32 0.0, %v1194
        %v1196 = vpop.f32.mrb[0].mxu0
        %v1197 = vadd.f32 0.0, %v1196
        %v1198 = vpop.f32.mrb[0].mxu0
        %v1199 = vadd.f32 0.0, %v1198
        %v1200 = vpop.f32.mrb[0].mxu0
        %v1201 = vadd.f32 0.0, %v1200
        %1202 = vdwg.mxu0
        %v1205 = vunpack.c.l.b16 %v1132
        %v1206 = vunpack.c.l.b16 %v1133
        %v1207 = vpack.c.b16 %v1206, %v1205
        %1208 = vrot.lane.b32.xlu0 %v671, 15
        %v1209 = vpop.permute.xlu0 %1208
        %1210 = vrot.lane.b32.xlu0 %v672, 15
        %v1211 = vpop.permute.xlu0 %1210
        %1212 = vrot.lane.b32.xlu0 %v673, 15
        %v1213 = vpop.permute.xlu0 %1212
        %vm1214 = vcmask 121856
        %v1215 = vsel %vm1214, %v1209, %v1211
        %v1216 = vsel %vm1214, %v1211, %v1213
        %v1218 = vsel %vm683, %v1207, 0
        %v1221 = vand.u32 %v1215, %v689
        %v1224 = vand.u32 %v1216, %v689
        %1226 = vmatprep.subr.bf16.mxu0 %v1224
        %1227 = vmatpush1.bf16.msra.mxu0 %v1221
        %1228 = vmatprep.subr.bf16.mxu0 0
        %1229 = vmatpush1.bf16.msra.mxu0 0
        %1230 = vmatprep.subr.bf16.mxu0 0
        %1231 = vmatpush1.bf16.msra.mxu0 0
        %1232 = vmatprep.subr.bf16.mxu0 0
        %1233 = vmatpush1.bf16.msra.mxu0 0
        %1234 = vmatprep.subr.bf16.mxu0 0
        %1235 = vmatpush1.bf16.msra.mxu0 0
        %1236 = vmatprep.subr.bf16.mxu0 0
        %1237 = vmatpush1.bf16.msra.mxu0 0
        %1238 = vmatprep.subr.bf16.mxu0 0
        %1239 = vmatpush1.bf16.msra.mxu0 0
        %1240 = vmatprep.subr.bf16.mxu0 0
        %1241 = vmatpush1.bf16.msra.mxu0 0
        %1242 = vmatprep.subr.bf16.mxu0 0
        %1243 = vmatpush1.bf16.msra.mxu0 0
        %1244 = vmatprep.subr.bf16.mxu0 0
        %1245 = vmatpush1.bf16.msra.mxu0 0
        %1246 = vmatprep.subr.bf16.mxu0 0
        %1247 = vmatpush1.bf16.msra.mxu0 0
        %1248 = vmatprep.subr.bf16.mxu0 0
        %1249 = vmatpush1.bf16.msra.mxu0 0
        %1250 = vmatprep.subr.bf16.mxu0 0
        %1251 = vmatpush1.bf16.msra.mxu0 0
        %1252 = vmatprep.subr.bf16.mxu0 0
        %1253 = vmatpush1.bf16.msra.mxu0 0
        %1254 = vmatprep.subr.bf16.mxu0 0
        %1255 = vmatpush1.bf16.msra.mxu0 0
        %1256 = vmatprep.subr.bf16.mxu0 0
        %1257 = vmatpush1.bf16.msra.mxu0 0
        %1258 = vmatprep.mubr.bf16.mxu0 0
        %1259 = vmatmul.mubr.bf16.gmra.mrb[0].mxu0 %v1218
        %v1260 = vpop.f32.mrb[0].mxu0
        %v1261 = vadd.f32 %v1195, %v1260
        %v1262 = vpop.f32.mrb[0].mxu0
        %v1263 = vadd.f32 %v1197, %v1262
        %v1264 = vpop.f32.mrb[0].mxu0
        %v1265 = vadd.f32 %v1199, %v1264
        %v1266 = vpop.f32.mrb[0].mxu0
        %v1267 = vadd.f32 %v1201, %v1266
        %1268 = vdwg.mxu0
        %s1269 = scalar_lea.vmem [#allocation9], 64
        %v1270 = vld [vmem:[%s1269] sm:$0xf]
        %v1271 = vld [vmem:[%s1269 + $0x4] sm:$0x1]
        %v1274 = vunpack.c.l.b16 %v1270
        %v1275 = vunpack.c.l.b16 %v1271
        %v1276 = vpack.c.b16 %v1275, %v1274
        %1277 = vrot.lane.b32.xlu0 %v827, 111
        %v1278 = vpop.permute.xlu0 %1277
        %1279 = vrot.lane.b32.xlu0 %v828, 111
        %v1280 = vpop.permute.xlu0 %1279
        %1281 = vrot.lane.b32.xlu0 %v829, 111
        %v1282 = vpop.permute.xlu0 %1281
        %vm1283 = vcmask 908288
        %v1284 = vsel %vm1283, %v1278, %v1280
        %v1285 = vsel %vm1283, %v1280, %v1282
        %v1287 = vsel %vm683, %v1276, 0
        %v1290 = vand.u32 %v1284, %v689
        %v1293 = vand.u32 %v1285, %v689
        %1295 = vmatprep.subr.bf16.mxu0 %v1293
        %1296 = vmatpush1.bf16.msra.mxu0 %v1290
        %1297 = vmatprep.subr.bf16.mxu0 0
        %1298 = vmatpush1.bf16.msra.mxu0 0
        %1299 = vmatprep.subr.bf16.mxu0 0
        %1300 = vmatpush1.bf16.msra.mxu0 0
        %1301 = vmatprep.subr.bf16.mxu0 0
        %1302 = vmatpush1.bf16.msra.mxu0 0
        %1303 = vmatprep.subr.bf16.mxu0 0
        %1304 = vmatpush1.bf16.msra.mxu0 0
        %1305 = vmatprep.subr.bf16.mxu0 0
        %1306 = vmatpush1.bf16.msra.mxu0 0
        %1307 = vmatprep.subr.bf16.mxu0 0
        %1308 = vmatpush1.bf16.msra.mxu0 0
        %1309 = vmatprep.subr.bf16.mxu0 0
        %1310 = vmatpush1.bf16.msra.mxu0 0
        %1311 = vmatprep.subr.bf16.mxu0 0
        %1312 = vmatpush1.bf16.msra.mxu0 0
        %1313 = vmatprep.subr.bf16.mxu0 0
        %1314 = vmatpush1.bf16.msra.mxu0 0
        %1315 = vmatprep.subr.bf16.mxu0 0
        %1316 = vmatpush1.bf16.msra.mxu0 0
        %1317 = vmatprep.subr.bf16.mxu0 0
        %1318 = vmatpush1.bf16.msra.mxu0 0
        %1319 = vmatprep.subr.bf16.mxu0 0
        %1320 = vmatpush1.bf16.msra.mxu0 0
        %1321 = vmatprep.subr.bf16.mxu0 0
        %1322 = vmatpush1.bf16.msra.mxu0 0
        %1323 = vmatprep.subr.bf16.mxu0 0
        %1324 = vmatpush1.bf16.msra.mxu0 0
        %1325 = vmatprep.subr.bf16.mxu0 0
        %1326 = vmatpush1.bf16.msra.mxu0 0
        %1327 = vmatprep.mubr.bf16.mxu0 0
        %1328 = vmatmul.mubr.bf16.gmra.mrb[0].mxu0 %v1287
        %v1329 = vpop.f32.mrb[0].mxu0
        %v1330 = vadd.f32 0.0, %v1329
        %v1331 = vpop.f32.mrb[0].mxu0
        %v1332 = vadd.f32 0.0, %v1331
        %v1333 = vpop.f32.mrb[0].mxu0
        %v1334 = vadd.f32 0.0, %v1333
        %v1335 = vpop.f32.mrb[0].mxu0
        %v1336 = vadd.f32 0.0, %v1335
        %1337 = vdwg.mxu0
        %v1338 = vadd.f32 %v1261, %v1330
        %v1339 = vadd.f32 %v1263, %v1332
        %v1340 = vadd.f32 %v1265, %v1334
        %v1341 = vadd.f32 %v1267, %v1336
        %s1342 = scalar_lea.vmem %s5, 2
        %v1343 = vld [vmem:[%s1342] ss:$4 sm:$0x3]
        %v1345 = vlaneseq
        %v1346 = vshrl.u32 %v1345, 7
        %v1347 = vsub.s32 0, %v1346
        %v1348 = vrot.slane %v1343, %v1347
        %v1349 = vlaneseq
        %v1350 = vshrl.u32 %v1349, 7
        %v1351 = vsub.s32 1, %v1350
        %v1352 = vrot.slane %v1343, %v1351
        %v1355 = vmul.f32 %v1338, %v1348
        %v1356 = vmul.f32 %v1339, %v1352
        %v1357 = vmul.f32 %v1340, %v1348
        %v1358 = vmul.f32 %v1341, %v1352
        %v1359 = vadd.f32 %v1127, %v1355
        %v1360 = vadd.f32 %v1128, %v1356
        %v1361 = vadd.f32 %v1129, %v1357
        %v1362 = vadd.f32 %v1130, %v1358
        %v1363 = vmax.f32 %v1361, 0.0
        %v1364 = vmax.f32 %v1362, 0.0
        %v1365 = vmin.f32 %v1363, 1.0
        %v1366 = vmin.f32 %v1364, 1.0
        %v1367 = vadd.f32 %v1361, 1e-08
        %v1368 = vadd.f32 %v1362, 1e-08
        %v1369 = vrcp.pop %v1367
        %v1370 = vrcp.pop %v1368
        %v1371 = vmul.f32 %v1369, 72.0
        %v1372 = vmul.f32 %v1370, 72.0
        %v1373 = vmul.f32 %v1371, %v1365
        %v1374 = vmul.f32 %v1372, %v1366
        %v1375 = vlaneseq
        %v1376 = vshrl.u32 %v1375, 7
        %v1377 = vsub.s32 0, %v1376
        %v1378 = vrot.slane %v1373, %v1377
        %v1379 = vlaneseq
        %v1380 = vshrl.u32 %v1379, 7
        %v1381 = vsub.s32 0, %v1380
        %v1382 = vrot.slane %v1374, %v1381
        %v1383 = vmul.f32 %v1359, %v1378
        %v1384 = vmul.f32 %v1360, %v1382
        %v1385 = vld [vmem:[%s7] sm:$0xff]
        %1387 = vset.pattern.permute.xlu0 0
        %1388 = vperm.xlu0 %1387, %v1385
        %v1389 = vpop.permute.xlu0 %1388
        %v1391 = vadd.f32 %v1383, %v1389
        %v1392 = vadd.f32 %v1384, %v1389
        %v1393 = vlaneseq
        %v1394 = vshrl.u32 %v1393, 7
        %v1395 = vsub.s32 0, %v1394
        %v1396 = vrot.slane %v1365, %v1395
        %v1397 = vlaneseq
        %v1398 = vshrl.u32 %v1397, 7
        %v1399 = vsub.s32 0, %v1398
        %v1400 = vrot.slane %v1366, %v1399
        %v1401 = vmul.f32 %v1391, %v1396
        %v1402 = vmul.f32 %v1392, %v1400
        %1403 = vst [vmem:[%s447] sm:$0xff] %v1401
        %1404 = vst [vmem:[%s447 + $0x8] sm:$0xff] %v1402
        %v1407 = vcombine.low %v1365, %v1366
        %v1409 = vunpack.c.l.s4 1966171168
        %v1410 = vunpack.c.0.s8 %v1409
        %v1411 = vlaneseq
        %v1412 = vshrl.u32 %v1411, 7
        %v1413 = vsub.s32 %v1410, %v1412
        %v1414 = vrot.slane %v1407, %v1413
        %v1416 = vunpack.c.l.s4 1966171168
        %v1417 = vunpack.c.0.s8 %v1416
        %v1418 = vlaneseq
        %v1419 = vshrl.u32 %v1418, 7
        %v1420 = vsub.s32 %v1417, %v1419
        %v1421 = vrot.slane %v1414, %v1420
        %v1423 = vlaneseq
        %vm1424 = vcmp.ge.s32.totalorder %v1423, 0
        %vm1425 = vcmp.lt.s32.totalorder %v1423, 256
        %vm1426 = vmand %vm1424, %vm1425
        %1427 = vst.msk [vmem:[%s454] sm:$0x3] %vm1426, %v1421
        %s1428 = sand.u32 %s230, 1
        %s1429 = scalar_lea.sflag [#allocation5], %s1428
        %s1430 = sand.u32 %s230, 1
        %s1431 = smul.addr %s1430, 16
        %s1432 = scalar_lea.vmem [#allocation11], %s1431
        %s1433 = sand.u32 %s256, 1
        %s1434 = scalar_lea.sflag [#allocation13], %s1433
        %s1435 = sand.u32 %s256, 1
        %s1436 = smul.addr %s1435, 2
        %s1437 = scalar_lea.vmem [#allocation12], %s1436
        // Predicated region
        $region69: #{tpu_custom_call.1} parent=51 // pred_check
          %p1438 = pneg %p240
        $region70: #{tpu_custom_call.1} parent=51 // pred_check_branch
          %1440 = sbr.rel (%p1438) target = $region72
        $region71: #{tpu_custom_call.1} parent=51 // pred_region
          %s1442 = ssub.s32 256, 256
          %1443 = vsyncadd %s1429, %s1442
          %s1444 = smul.addr %s34, 2
          %s1445 = smul.addr %s1444, 128
          %s1446 = scalar_lea.hbm %s8, %s1445
          %s1448 = sshll.u32 %s1432, 4
          %s1449 = int_to_ptr.vmem [resolvable:$true] %s1448
          %1451 = dma.vmem_to_hbm [thread:$0]  %s1449, 256, %s1446, %s1429
        $region72: #{tpu_custom_call.1} parent=51 // pred_fallthru
          _
        // Predicated region
        $region73: #{tpu_custom_call.1} parent=51 // pred_check
          %p1452 = pneg %p266
        $region74: #{tpu_custom_call.1} parent=51 // pred_check_branch
          %1454 = sbr.rel (%p1452) target = $region76
        $region75: #{tpu_custom_call.1} parent=51 // pred_region
          %s1456 = ssub.s32 32, 32
          %1457 = vsyncadd %s1434, %s1456
          %s1458 = smul.addr %s34, 2
          %s1459 = smul.addr %s1458, 16
          %s1460 = scalar_lea.hbm %s9, %s1459
          %s1462 = sshll.u32 %s1437, 4
          %s1463 = int_to_ptr.vmem [resolvable:$true] %s1462
          %1465 = dma.vmem_to_hbm [thread:$0]  %s1463, 32, %s1460, %s1434
        $region76: #{tpu_custom_call.1} parent=51 // pred_fallthru
          _
      $region52: #{tpu_custom_call.1} parent=5 // pred_fallthru
        _
      %p1466 = scmp.le.s32.totalorder 2, %s29
      // Predicated region
      $region77: #{tpu_custom_call.1} parent=5 // pred_check
        %p1467 = pneg %p1466
      $region78: #{tpu_custom_call.1} parent=5 // pred_check_branch
        %1469 = sbr.rel (%p1467) target = $region80
      $region79: #{tpu_custom_call.1} parent=5 // pred_region
        %s1470 = ssub.s32 %s29, 2
        // Predicated region
        $region81: #{tpu_custom_call.1} parent=79 // pred_check
          %p1471 = pneg %p246
        $region82: #{tpu_custom_call.1} parent=79 // pred_check_branch
          %1473 = sbr.rel (%p1471) target = $region84
        $region83: #{tpu_custom_call.1} parent=79 // pred_region
          %s1474 = sand.u32 %s231, 1
          %s1475 = scalar_lea.sflag [#allocation5], %s1474
          %s1476 = sand.u32 %s231, 1
          %s1477 = smul.addr %s1476, 16
          %s1478 = scalar_lea.vmem [#allocation11], %s1477
          %1479 = dma.done %s1475, 256
        $region84: #{tpu_custom_call.1} parent=79 // pred_fallthru
          _
        // Predicated region
        $region85: #{tpu_custom_call.1} parent=79 // pred_check
          %p1480 = pneg %p272
        $region86: #{tpu_custom_call.1} parent=79 // pred_check_branch
          %1482 = sbr.rel (%p1480) target = $region88
        $region87: #{tpu_custom_call.1} parent=79 // pred_region
          %s1483 = sand.u32 %s257, 1
          %s1484 = scalar_lea.sflag [#allocation13], %s1483
          %s1485 = sand.u32 %s257, 1
          %s1486 = smul.addr %s1485, 2
          %s1487 = scalar_lea.vmem [#allocation12], %s1486
          %1488 = dma.done %s1484, 32
        $region88: #{tpu_custom_call.1} parent=79 // pred_fallthru
          _
      $region80: #{tpu_custom_call.1} parent=5 // pred_fallthru
        _
    $region6: #{tpu_custom_call.1} parent=1 // loop_footer
      %s33 = sadd.s32 1, %s29
    $region7: #{tpu_custom_call.1} parent=1 // loop_footer_branch
      %28 = sbr.rel target = $region3
    $region8: #{tpu_custom_call.1} parent=1 // loop_exit
      _
    %1489 = vsyncpa [#allocation4], 1
    %s1490 = scalar_lea.sflag [#allocation4], 1
    %1491 = vsyncpa %s1490, 1
    %1492 = vsyncpa [#allocation7], 1
    %s1493 = scalar_lea.sflag [#allocation7], 1
    %1494 = vsyncpa %s1493, 1
    %1495 = vsyncpa [#allocation10], 1
    %1496 = vsyncpa [#allocation5], 1
    %s1497 = scalar_lea.sflag [#allocation5], 1
    %1498 = vsyncpa %s1497, 1
    %1499 = vsyncpa [#allocation13], 1
    %s1500 = scalar_lea.sflag [#allocation13], 1
    %1501 = vsyncpa %s1500, 1

</llo_original>
